<compile_context>
chip_gen: v7x
topology: tpu7x:2x2x1
jax: 0.10.0
libtpu: 0.0.40
codegen_flags: <defaults>
</compile_context>

<pallas_src>
import functools

import jax
import jax.numpy as jnp
import numpy as np
from jax.experimental import pallas as pl
from jax.experimental.pallas import tpu as pltpu

NEG_SLOPE = 0.01  # nn.LeakyReLU default


# ----------------------------- fused kernel -------------------------------- #

def _shift_rows(a, k):
    """result[m, :] = a[m + k, :] (k static), zero-filled at the edges."""
    if k == 0:
        return a
    rows, cols = a.shape
    z = jnp.zeros((abs(k), cols), a.dtype)
    if k > 0:
        return jnp.concatenate([a[k:, :], z], axis=0)
    return jnp.concatenate([z, a[:rows + k, :]], axis=0)


def _obd_fused_kernel(x_ref, g1_ref, b1_ref, s1_ref, g2_ref, b2_ref, s2_ref,
                      wf_ref, bf_ref, out_ref, *, bs):
    f32 = jnp.float32
    m1 = bs * 16  # rows per step: one 16-row slab per sample

    # ---- conv1 + bias + LeakyReLU: one K-stacked banded matmul -------------
    # input slab row s = padded image rows (2s | 2s+1) in two 28-col halves;
    # output slab row t = conv rows (2(t-1) | 2(t-1)+1), col = po*104 + x*4+oc.
    x2 = x_ref[...].reshape(m1, 56)
    xk = jnp.concatenate(
        [_shift_rows(x2, -1), x2, _shift_rows(x2, 1)], axis=1)        # (m1, 168)
    z1 = jnp.dot(xk, g1_ref[...], preferred_element_type=f32) + b1_ref[...]
    l1 = jnp.where(z1 >= 0, z1, NEG_SLOPE * z1)                       # (m1, 208)

    # ---- maxpool1: rows = lane-half max, cols = fused [SE|SO] matmul -------
    r1 = jnp.maximum(l1[:, 0:104], l1[:, 104:208])                    # (m1, 104)
    c1 = jnp.dot(r1, s1_ref[...], preferred_element_type=f32)         # (m1, 120)
    p1 = jnp.maximum(c1[:, 0:60], c1[:, 60:120])                      # (m1, 60)
    # zero the conv2 padding rows of each 16-row slab (slab rows 0, 14, 15)
    t = jax.lax.broadcasted_iota(jnp.int32, (m1, 1), 0) & 15
    p1 = jnp.where((t >= 1) & (t <= 13), p1, 0.0)

    # ---- conv2 + bias + LeakyReLU: one K-stacked banded matmul -------------
    pk = jnp.concatenate([_shift_rows(p1, k) for k in range(5)], axis=1)  # (m1, 300)
    z2 = jnp.dot(pk, g2_ref[...], preferred_element_type=f32) + b2_ref[...]
    l2 = jnp.where(z2 >= 0, z2, NEG_SLOPE * z2)                       # (m1, 132)

    # ---- maxpool2: cols via [SE|SO] matmul, rows via shifted max -----------
    c2 = jnp.dot(l2, s2_ref[...], preferred_element_type=f32)         # (m1, 120)
    q2 = jnp.maximum(c2[:, 0:60], c2[:, 60:120])                      # (m1, 60)
    m2 = jnp.maximum(q2, _shift_rows(q2, 1)).reshape(bs, 16, 60)

    # ---- flatten (even slab rows 0,2,4,6,8) + Linear(300, 10) --------------
    feat = jnp.concatenate([m2[:, 2 * i, :] for i in range(5)], axis=1)  # (bs, 300)
    out_ref[...] = (jnp.dot(feat, wf_ref[...], preferred_element_type=f32)
                    + bf_ref[...])


# --------------------- one-time weight preprocessing ----------------------- #

def prepare_params(params):
    """PyTorch-layout params -> constant matrices consumed by the kernel."""
    w1, b1, w2, b2, wf, bf = [np.asarray(p, dtype=np.float32) for p in params]

    # conv1 K-stacked banded weights for the parity-packed layout: (168, 208)
    #   row    = jblock*56 + pc*28 + c   (jblock <-> input slab shift j=-1,0,+1)
    #   column = po*104 + x*4 + oc
    #   value  = w1[oc, 0, ky, kx], ky = 2j+2+pc-po, kx = c+1-x, 0<=ky,kx<=4
    G1 = np.zeros((3, 2, 28, 2, 26, 4), np.float32)
    for jj, j in enumerate((-1, 0, 1)):
        for pc in range(2):
            for po in range(2):
                ky = 2 * j + 2 + pc - po
                if not 0 <= ky <= 4:
                    continue
                for x in range(26):
                    for kx in range(5):
                        c = x + kx - 1
                        if 0 <= c < 28:
                            G1[jj, pc, c, po, x, :] = w1[:, 0, ky, kx]
    g1k = G1.reshape(168, 208)
    b1r = np.tile(b1, 52).reshape(1, 208)

    # pool1 column selection (+ conv2 zero-padded input layout): (104, 120)
    #   [even-x half | odd-x half]; column inside a half = ic*15 + q, q=1..13
    S1 = np.zeros((26, 4, 2, 4, 15), np.float32)
    for ic in range(4):
        for q in range(1, 14):
            S1[2 * (q - 1), ic, 0, ic, q] = 1.0
            S1[2 * (q - 1) + 1, ic, 1, ic, q] = 1.0
    s1 = S1.reshape(104, 120)

    # conv2 K-stacked banded weights: (300, 132)
    #   row = ky*60 + ic*15 + q ; col = x2*12 + oc ; value = w2[oc,ic,ky,q-x2]
    G2 = np.zeros((5, 4, 15, 11, 12), np.float32)
    for ky in range(5):
        for x2 in range(11):
            for kx in range(5):
                G2[ky, :, x2 + kx, x2, :] = w2[:, :, ky, kx].T
    g2k = G2.reshape(300, 132)
    b2r = np.tile(b2, 11).reshape(1, 132)

    # pool2 column selection: (132, 120) = [even-x2 half | odd-x2 half]
    S2 = np.zeros((11, 12, 2, 5, 12), np.float32)
    for oc in range(12):
        for j in range(5):
            S2[2 * j, oc, 0, j, oc] = 1.0
            S2[2 * j + 1, oc, 1, j, oc] = 1.0
    s2 = S2.reshape(132, 120)

    # final Linear: PyTorch NCHW flatten order folded into the row order
    #   feat column = i*60 + j*12 + oc  ->  wf[:, oc*25 + i*5 + j]
    wfc = wf.reshape(10, 12, 5, 5).transpose(2, 3, 1, 0).reshape(300, 10)
    bfr = bf.reshape(1, 10)

    consts = (g1k, b1r, s1, g2k, b2r, s2, wfc, bfr)
    return tuple(jnp.asarray(c) for c in consts)


# ------------------------------- wrapper ------------------------------------ #

def _round_up(n, m):
    return ((n + m - 1) // m) * m


@functools.partial(jax.jit, static_argnames=("block_size",))
def obd_forward(x, prepped, block_size=32):
    """x: (B, 1, 28, 28) float32 -> logits (B, 10)."""
    assert block_size % 8 == 0
    assert x.shape[1:] == (1, 28, 28), "OBD expects (B, 1, 28, 28) inputs"
    g1k, b1r, s1, g2k, b2r, s2, wfc, bfr = prepped

    B = x.shape[0]
    bs = min(block_size, _round_up(B, 8))      # samples per grid step
    bpad = _round_up(B, bs)
    grid = bpad // bs

    # Single fused layout pass: pad rows 28 -> 32 (1 top / 3 bottom zeros) and
    # pack row pairs into lanes -> (bpad, 16, 56): slab row s = padded rows
    # (2s | 2s+1).  (Replaces the previous standalone jnp.pad to 30 rows.)
    xp = jnp.pad(x.reshape(B, 28, 28).astype(jnp.float32),
                 ((0, bpad - B), (1, 3), (0, 0)))
    xpair = xp.reshape(bpad, 16, 56)

    consts = (g1k, b1r, s1, g2k, b2r, s2, wfc, bfr)

    def _const_spec(a):
        return pl.BlockSpec(a.shape, lambda g, _nd=a.ndim: (0,) * _nd)

    out = pl.pallas_call(
        functools.partial(_obd_fused_kernel, bs=bs),
        out_shape=jax.ShapeDtypeStruct((bpad, 10), jnp.float32),
        grid=(grid,),
        in_specs=[pl.BlockSpec((bs, 16, 56), lambda g: (g, 0, 0))]
                 + [_const_spec(a) for a in consts],
        out_specs=pl.BlockSpec((bs, 10), lambda g: (g, 0)),
        compiler_params=pltpu.CompilerParams(
            dimension_semantics=("parallel",)),
    )(xpair, *consts)
    return out[:B]


# --------------------------- reference (pure JAX) --------------------------- #

def obd_reference(x, params):
    w1, b1, w2, b2, wf, bf = params

    def conv(x, w, b):
        y = jax.lax.conv_general_dilated(
            x, w, window_strides=(1, 1), padding=((1, 1), (1, 1)),
            dimension_numbers=("NCHW", "OIHW", "NCHW"))
        return y + b[None, :, None, None]

    leaky = lambda t: jnp.where(t >= 0, t, NEG_SLOPE * t)
    pool = lambda t: jax.lax.reduce_window(
        t, -jnp.inf, jax.lax.max, (1, 1, 2, 2), (1, 1, 2, 2), "VALID")

    y = pool(leaky(conv(x, w1, b1)))
    y = pool(leaky(conv(y, w2, b2)))
    y = y.reshape(y.shape[0], -1)
    return y @ wf.T + bf


# --------------------------------- main ------------------------------------ #

def init_params(key):
    k1, k2, k3, k4, k5, k6 = jax.random.split(key, 6)
    w1 = jax.random.normal(k1, (4, 1, 5, 5), jnp.float32) * 0.1
    b1 = jax.random.normal(k2, (4,), jnp.float32) * 0.1
    w2 = jax.random.normal(k3, (12, 4, 5, 5), jnp.float32) * 0.1
    b2 = jax.random.normal(k4, (12,), jnp.float32) * 0.1
    wf = jax.random.normal(k5, (10, 300), jnp.float32) * 0.05
    bf = jax.random.normal(k6, (10,), jnp.float32) * 0.05
    return (w1, b1, w2, b2, wf, bf)


if __name__ == "__main__":
    key = jax.random.PRNGKey(0)
    kx_, kp_ = jax.random.split(key)
    # Linear(300,10) = 12*5*5 implies 28x28 single-channel input (MNIST-like).
    x = jax.random.normal(kx_, (2, 1, 28, 28), jnp.float32)
    params = init_params(kp_)

    prepped = prepare_params(params)          # one-time weight preprocessing

    out = jax.block_until_ready(obd_forward(x, prepped))
    ref = jax.block_until_ready(obd_reference(x, params))
    assert out.shape == (2, 10)
    np.testing.assert_allclose(np.asarray(out), np.asarray(ref),
                               rtol=1e-3, atol=1e-3)

    # Larger batch: exercises multiple grid steps (batched M=BS*16 matmuls,
    # grid=2 so both v7x TensorCores get work).
    xb = jax.random.normal(kx_, (64, 1, 28, 28), jnp.float32)
    outb = jax.block_until_ready(obd_forward(xb, prepped))
    refb = jax.block_until_ready(obd_reference(xb, params))
    np.testing.assert_allclose(np.asarray(outb), np.asarray(refb),
                               rtol=1e-3, atol=1e-3)

    print("KERNEL_OK")
</pallas_src>

<mosaic_0001>
module attributes {stable_mosaic.version = 11 : i64} {
  func.func @_obd_fused_kernel(%arg0: i32, %arg1: memref<8x16x56xf32, #tpu.memory_space<vmem>>, %arg2: memref<168x208xf32, #tpu.memory_space<vmem>>, %arg3: memref<1x208xf32, #tpu.memory_space<vmem>>, %arg4: memref<104x120xf32, #tpu.memory_space<vmem>>, %arg5: memref<300x132xf32, #tpu.memory_space<vmem>>, %arg6: memref<1x132xf32, #tpu.memory_space<vmem>>, %arg7: memref<132x120xf32, #tpu.memory_space<vmem>>, %arg8: memref<300x10xf32, #tpu.memory_space<vmem>>, %arg9: memref<1x10xf32, #tpu.memory_space<vmem>>, %arg10: memref<8x10xf32, #tpu.memory_space<vmem>>) attributes {dimension_semantics = [#tpu.dimension_semantics<parallel>], iteration_bounds = array<i64: 1>, scalar_prefetch = 0 : i64, scratch_operands = 0 : i64, tpu.core_type = #tpu.core_type<tc>, window_params = [{transform_indices = @transform_0, window_bounds = array<i64: 8, 16, 56>}, {pipeline_mode = #tpu.pipeline_mode<synchronous>, transform_indices = @transform_1, window_bounds = array<i64: 168, 208>}, {pipeline_mode = #tpu.pipeline_mode<synchronous>, transform_indices = @transform_2, window_bounds = array<i64: 1, 208>}, {pipeline_mode = #tpu.pipeline_mode<synchronous>, transform_indices = @transform_3, window_bounds = array<i64: 104, 120>}, {pipeline_mode = #tpu.pipeline_mode<synchronous>, transform_indices = @transform_4, window_bounds = array<i64: 300, 132>}, {pipeline_mode = #tpu.pipeline_mode<synchronous>, transform_indices = @transform_5, window_bounds = array<i64: 1, 132>}, {pipeline_mode = #tpu.pipeline_mode<synchronous>, transform_indices = @transform_6, window_bounds = array<i64: 132, 120>}, {pipeline_mode = #tpu.pipeline_mode<synchronous>, transform_indices = @transform_7, window_bounds = array<i64: 300, 10>}, {pipeline_mode = #tpu.pipeline_mode<synchronous>, transform_indices = @transform_8, window_bounds = array<i64: 1, 10>}, {transform_indices = @transform_9, window_bounds = array<i64: 8, 10>}]} {
    %c0 = arith.constant 0 : index
    %c0_0 = arith.constant 0 : index
    %c0_1 = arith.constant 0 : index
    %0 = vector.load %arg1[%c0, %c0_0, %c0_1] : memref<8x16x56xf32, #tpu.memory_space<vmem>>, vector<8x16x56xf32>
    %1 = vector.shape_cast %0 : vector<8x16x56xf32> to vector<128x56xf32>
    %cst = arith.constant 0.000000e+00 : f32
    %2 = vector.broadcast %cst : f32 to vector<1x56xf32>
    %3 = vector.extract_strided_slice %1 {offsets = [0, 0], sizes = [127, 56], strides = [1, 1]} : vector<128x56xf32> to vector<127x56xf32>
    %4 = tpu.concatenate %2, %3 in 0 : vector<1x56xf32>, vector<127x56xf32> -> vector<128x56xf32>
    %cst_2 = arith.constant 0.000000e+00 : f32
    %5 = vector.broadcast %cst_2 : f32 to vector<1x56xf32>
    %6 = vector.extract_strided_slice %1 {offsets = [1, 0], sizes = [127, 56], strides = [1, 1]} : vector<128x56xf32> to vector<127x56xf32>
    %7 = tpu.concatenate %6, %5 in 0 : vector<127x56xf32>, vector<1x56xf32> -> vector<128x56xf32>
    %8 = tpu.concatenate %4, %1, %7 in 1 : vector<128x56xf32>, vector<128x56xf32>, vector<128x56xf32> -> vector<128x168xf32>
    %c0_3 = arith.constant 0 : index
    %c0_4 = arith.constant 0 : index
    %9 = vector.load %arg2[%c0_3, %c0_4] : memref<168x208xf32, #tpu.memory_space<vmem>>, vector<168x208xf32>
    %cst_5 = arith.constant dense<0.000000e+00> : vector<128x208xf32>
    %10 = tpu.matmul %8, %9, %cst_5 {dimension_numbers = #tpu.dot_dimension_numbers<[1], [0], [0], [1], [0, 0, 1, 1], [], []>} : vector<128x168xf32>, vector<168x208xf32>, vector<128x208xf32> -> vector<128x208xf32>
    %c0_6 = arith.constant 0 : index
    %c0_7 = arith.constant 0 : index
    %11 = vector.load %arg3[%c0_6, %c0_7] : memref<1x208xf32, #tpu.memory_space<vmem>>, vector<1x208xf32>
    %12 = vector.broadcast %11 : vector<1x208xf32> to vector<128x208xf32>
    %13 = arith.addf %10, %12 : vector<128x208xf32>
    %cst_8 = arith.constant 0.000000e+00 : f32
    %14 = vector.broadcast %cst_8 : f32 to vector<128x208xf32>
    %15 = arith.cmpf oge, %13, %14 : vector<128x208xf32>
    %cst_9 = arith.constant 0.00999999977 : f32
    %16 = vector.broadcast %cst_9 : f32 to vector<128x208xf32>
    %17 = arith.mulf %16, %13 : vector<128x208xf32>
    %18 = arith.select %15, %13, %17 : vector<128x208xi1>, vector<128x208xf32>
    %19 = vector.extract_strided_slice %18 {offsets = [0, 0], sizes = [128, 104], strides = [1, 1]} : vector<128x208xf32> to vector<128x104xf32>
    %20 = vector.extract_strided_slice %18 {offsets = [0, 104], sizes = [128, 104], strides = [1, 1]} : vector<128x208xf32> to vector<128x104xf32>
    %21 = arith.maximumf %19, %20 : vector<128x104xf32>
    %c0_10 = arith.constant 0 : index
    %c0_11 = arith.constant 0 : index
    %22 = vector.load %arg4[%c0_10, %c0_11] : memref<104x120xf32, #tpu.memory_space<vmem>>, vector<104x120xf32>
    %cst_12 = arith.constant dense<0.000000e+00> : vector<128x120xf32>
    %23 = tpu.matmul %21, %22, %cst_12 {dimension_numbers = #tpu.dot_dimension_numbers<[1], [0], [0], [1], [0, 0, 1, 1], [], []>} : vector<128x104xf32>, vector<104x120xf32>, vector<128x120xf32> -> vector<128x120xf32>
    %24 = vector.extract_strided_slice %23 {offsets = [0, 0], sizes = [128, 60], strides = [1, 1]} : vector<128x120xf32> to vector<128x60xf32>
    %25 = vector.extract_strided_slice %23 {offsets = [0, 60], sizes = [128, 60], strides = [1, 1]} : vector<128x120xf32> to vector<128x60xf32>
    %26 = arith.maximumf %24, %25 : vector<128x60xf32>
    %27 = tpu.iota {dimensions = array<i32: 0>} : vector<128x1xi32>
    %c15_i32 = arith.constant 15 : i32
    %28 = vector.broadcast %c15_i32 : i32 to vector<128x1xi32>
    %29 = arith.andi %27, %28 : vector<128x1xi32>
    %c1_i32 = arith.constant 1 : i32
    %30 = vector.broadcast %c1_i32 : i32 to vector<128x1xi32>
    %31 = arith.cmpi sge, %29, %30 : vector<128x1xi32>
    %c13_i32 = arith.constant 13 : i32
    %32 = vector.broadcast %c13_i32 : i32 to vector<128x1xi32>
    %33 = arith.cmpi sle, %29, %32 : vector<128x1xi32>
    %34 = arith.andi %31, %33 : vector<128x1xi1>
    %cst_13 = arith.constant 0.000000e+00 : f32
    %35 = vector.shape_cast %34 : vector<128x1xi1> to vector<128x1xi1>
    %36 = vector.broadcast %35 : vector<128x1xi1> to vector<128x60xi1>
    %37 = vector.broadcast %cst_13 : f32 to vector<128x60xf32>
    %38 = arith.select %36, %26, %37 : vector<128x60xi1>, vector<128x60xf32>
    %cst_14 = arith.constant 0.000000e+00 : f32
    %39 = vector.broadcast %cst_14 : f32 to vector<1x60xf32>
    %40 = vector.extract_strided_slice %38 {offsets = [1, 0], sizes = [127, 60], strides = [1, 1]} : vector<128x60xf32> to vector<127x60xf32>
    %41 = tpu.concatenate %40, %39 in 0 : vector<127x60xf32>, vector<1x60xf32> -> vector<128x60xf32>
    %cst_15 = arith.constant 0.000000e+00 : f32
    %42 = vector.broadcast %cst_15 : f32 to vector<2x60xf32>
    %43 = vector.extract_strided_slice %38 {offsets = [2, 0], sizes = [126, 60], strides = [1, 1]} : vector<128x60xf32> to vector<126x60xf32>
    %44 = tpu.concatenate %43, %42 in 0 : vector<126x60xf32>, vector<2x60xf32> -> vector<128x60xf32>
    %cst_16 = arith.constant 0.000000e+00 : f32
    %45 = vector.broadcast %cst_16 : f32 to vector<3x60xf32>
    %46 = vector.extract_strided_slice %38 {offsets = [3, 0], sizes = [125, 60], strides = [1, 1]} : vector<128x60xf32> to vector<125x60xf32>
    %47 = tpu.concatenate %46, %45 in 0 : vector<125x60xf32>, vector<3x60xf32> -> vector<128x60xf32>
    %cst_17 = arith.constant 0.000000e+00 : f32
    %48 = vector.broadcast %cst_17 : f32 to vector<4x60xf32>
    %49 = vector.extract_strided_slice %38 {offsets = [4, 0], sizes = [124, 60], strides = [1, 1]} : vector<128x60xf32> to vector<124x60xf32>
    %50 = tpu.concatenate %49, %48 in 0 : vector<124x60xf32>, vector<4x60xf32> -> vector<128x60xf32>
    %51 = tpu.concatenate %38, %41, %44, %47, %50 in 1 : vector<128x60xf32>, vector<128x60xf32>, vector<128x60xf32>, vector<128x60xf32>, vector<128x60xf32> -> vector<128x300xf32>
    %c0_18 = arith.constant 0 : index
    %c0_19 = arith.constant 0 : index
    %52 = vector.load %arg5[%c0_18, %c0_19] : memref<300x132xf32, #tpu.memory_space<vmem>>, vector<300x132xf32>
    %cst_20 = arith.constant dense<0.000000e+00> : vector<128x132xf32>
    %53 = tpu.matmul %51, %52, %cst_20 {dimension_numbers = #tpu.dot_dimension_numbers<[1], [0], [0], [1], [0, 0, 1, 1], [], []>} : vector<128x300xf32>, vector<300x132xf32>, vector<128x132xf32> -> vector<128x132xf32>
    %c0_21 = arith.constant 0 : index
    %c0_22 = arith.constant 0 : index
    %54 = vector.load %arg6[%c0_21, %c0_22] : memref<1x132xf32, #tpu.memory_space<vmem>>, vector<1x132xf32>
    %55 = vector.broadcast %54 : vector<1x132xf32> to vector<128x132xf32>
    %56 = arith.addf %53, %55 : vector<128x132xf32>
    %cst_23 = arith.constant 0.000000e+00 : f32
    %57 = vector.broadcast %cst_23 : f32 to vector<128x132xf32>
    %58 = arith.cmpf oge, %56, %57 : vector<128x132xf32>
    %cst_24 = arith.constant 0.00999999977 : f32
    %59 = vector.broadcast %cst_24 : f32 to vector<128x132xf32>
    %60 = arith.mulf %59, %56 : vector<128x132xf32>
    %61 = arith.select %58, %56, %60 : vector<128x132xi1>, vector<128x132xf32>
    %c0_25 = arith.constant 0 : index
    %c0_26 = arith.constant 0 : index
    %62 = vector.load %arg7[%c0_25, %c0_26] : memref<132x120xf32, #tpu.memory_space<vmem>>, vector<132x120xf32>
    %cst_27 = arith.constant dense<0.000000e+00> : vector<128x120xf32>
    %63 = tpu.matmul %61, %62, %cst_27 {dimension_numbers = #tpu.dot_dimension_numbers<[1], [0], [0], [1], [0, 0, 1, 1], [], []>} : vector<128x132xf32>, vector<132x120xf32>, vector<128x120xf32> -> vector<128x120xf32>
    %64 = vector.extract_strided_slice %63 {offsets = [0, 0], sizes = [128, 60], strides = [1, 1]} : vector<128x120xf32> to vector<128x60xf32>
    %65 = vector.extract_strided_slice %63 {offsets = [0, 60], sizes = [128, 60], strides = [1, 1]} : vector<128x120xf32> to vector<128x60xf32>
    %66 = arith.maximumf %64, %65 : vector<128x60xf32>
    %cst_28 = arith.constant 0.000000e+00 : f32
    %67 = vector.broadcast %cst_28 : f32 to vector<1x60xf32>
    %68 = vector.extract_strided_slice %66 {offsets = [1, 0], sizes = [127, 60], strides = [1, 1]} : vector<128x60xf32> to vector<127x60xf32>
    %69 = tpu.concatenate %68, %67 in 0 : vector<127x60xf32>, vector<1x60xf32> -> vector<128x60xf32>
    %70 = arith.maximumf %66, %69 : vector<128x60xf32>
    %71 = vector.shape_cast %70 : vector<128x60xf32> to vector<8x16x60xf32>
    %72 = vector.extract_strided_slice %71 {offsets = [0, 0, 0], sizes = [8, 1, 60], strides = [1, 1, 1]} : vector<8x16x60xf32> to vector<8x1x60xf32>
    %73 = vector.shape_cast %72 : vector<8x1x60xf32> to vector<8x60xf32>
    %74 = vector.extract_strided_slice %71 {offsets = [0, 2, 0], sizes = [8, 1, 60], strides = [1, 1, 1]} : vector<8x16x60xf32> to vector<8x1x60xf32>
    %75 = vector.shape_cast %74 : vector<8x1x60xf32> to vector<8x60xf32>
    %76 = vector.extract_strided_slice %71 {offsets = [0, 4, 0], sizes = [8, 1, 60], strides = [1, 1, 1]} : vector<8x16x60xf32> to vector<8x1x60xf32>
    %77 = vector.shape_cast %76 : vector<8x1x60xf32> to vector<8x60xf32>
    %78 = vector.extract_strided_slice %71 {offsets = [0, 6, 0], sizes = [8, 1, 60], strides = [1, 1, 1]} : vector<8x16x60xf32> to vector<8x1x60xf32>
    %79 = vector.shape_cast %78 : vector<8x1x60xf32> to vector<8x60xf32>
    %80 = vector.extract_strided_slice %71 {offsets = [0, 8, 0], sizes = [8, 1, 60], strides = [1, 1, 1]} : vector<8x16x60xf32> to vector<8x1x60xf32>
    %81 = vector.shape_cast %80 : vector<8x1x60xf32> to vector<8x60xf32>
    %82 = tpu.concatenate %73, %75, %77, %79, %81 in 1 : vector<8x60xf32>, vector<8x60xf32>, vector<8x60xf32>, vector<8x60xf32>, vector<8x60xf32> -> vector<8x300xf32>
    %c0_29 = arith.constant 0 : index
    %c0_30 = arith.constant 0 : index
    %83 = vector.load %arg8[%c0_29, %c0_30] : memref<300x10xf32, #tpu.memory_space<vmem>>, vector<300x10xf32>
    %cst_31 = arith.constant dense<0.000000e+00> : vector<8x10xf32>
    %84 = tpu.matmul %82, %83, %cst_31 {dimension_numbers = #tpu.dot_dimension_numbers<[1], [0], [0], [1], [0, 0, 1, 1], [], []>} : vector<8x300xf32>, vector<300x10xf32>, vector<8x10xf32> -> vector<8x10xf32>
    %c0_32 = arith.constant 0 : index
    %c0_33 = arith.constant 0 : index
    %85 = vector.load %arg9[%c0_32, %c0_33] : memref<1x10xf32, #tpu.memory_space<vmem>>, vector<1x10xf32>
    %86 = vector.broadcast %85 : vector<1x10xf32> to vector<8x10xf32>
    %87 = arith.addf %84, %86 : vector<8x10xf32>
    %c0_34 = arith.constant 0 : index
    %c0_35 = arith.constant 0 : index
    %88 = vector.load %arg10[%c0_34, %c0_35] : memref<8x10xf32, #tpu.memory_space<vmem>>, vector<8x10xf32>
    tpu.vector_store %arg10[%c0_34, %c0_35], %87 {strides = array<i32>} : memref<8x10xf32, #tpu.memory_space<vmem>>, vector<8x10xf32>,
    return
  }
  func.func @transform_0(%arg0: i32) -> (i32, i32, i32) {
    %c0_i32 = arith.constant 0 : i32
    %c0_i32_0 = arith.constant 0 : i32
    %c0_i32_1 = arith.constant 0 : i32
    return %arg0, %c0_i32, %c0_i32_0 : i32, i32, i32
  }
  func.func @transform_1(%arg0: i32) -> (i32, i32) {
    %c0_i32 = arith.constant 0 : i32
    %c0_i32_0 = arith.constant 0 : i32
    %c0_i32_1 = arith.constant 0 : i32
    return %c0_i32, %c0_i32_0 : i32, i32
  }
  func.func @transform_2(%arg0: i32) -> (i32, i32) {
    %c0_i32 = arith.constant 0 : i32
    %c0_i32_0 = arith.constant 0 : i32
    %c0_i32_1 = arith.constant 0 : i32
    return %c0_i32, %c0_i32_0 : i32, i32
  }
  func.func @transform_3(%arg0: i32) -> (i32, i32) {
    %c0_i32 = arith.constant 0 : i32
    %c0_i32_0 = arith.constant 0 : i32
    %c0_i32_1 = arith.constant 0 : i32
    return %c0_i32, %c0_i32_0 : i32, i32
  }
  func.func @transform_4(%arg0: i32) -> (i32, i32) {
    %c0_i32 = arith.constant 0 : i32
    %c0_i32_0 = arith.constant 0 : i32
    %c0_i32_1 = arith.constant 0 : i32
    return %c0_i32, %c0_i32_0 : i32, i32
  }
  func.func @transform_5(%arg0: i32) -> (i32, i32) {
    %c0_i32 = arith.constant 0 : i32
    %c0_i32_0 = arith.constant 0 : i32
    %c0_i32_1 = arith.constant 0 : i32
    return %c0_i32, %c0_i32_0 : i32, i32
  }
  func.func @transform_6(%arg0: i32) -> (i32, i32) {
    %c0_i32 = arith.constant 0 : i32
    %c0_i32_0 = arith.constant 0 : i32
    %c0_i32_1 = arith.constant 0 : i32
    return %c0_i32, %c0_i32_0 : i32, i32
  }
  func.func @transform_7(%arg0: i32) -> (i32, i32) {
    %c0_i32 = arith.constant 0 : i32
    %c0_i32_0 = arith.constant 0 : i32
    %c0_i32_1 = arith.constant 0 : i32
    return %c0_i32, %c0_i32_0 : i32, i32
  }
  func.func @transform_8(%arg0: i32) -> (i32, i32) {
    %c0_i32 = arith.constant 0 : i32
    %c0_i32_0 = arith.constant 0 : i32
    %c0_i32_1 = arith.constant 0 : i32
    return %c0_i32, %c0_i32_0 : i32, i32
  }
  func.func @transform_9(%arg0: i32) -> (i32, i32) {
    %c0_i32 = arith.constant 0 : i32
    %c0_i32_0 = arith.constant 0 : i32
    return %arg0, %c0_i32 : i32, i32
  }
}

</mosaic_0001>

<llo_original>
// kernel: obd_forward.1
$region0: #{obd_forward.1}
  #allocation0 [shape = 'u32[]', space=smem, size = 0x4, offset = 0x4, fixed_abs, tag = 'smem constant byte address 0x4 - core index']
  #allocation1 [shape = 'u32[144,128]{1,0:T(1,128)}', space=vmem, size = 0x12000, scoped, tag = 'internal scratch']
  %s0 = inlined_call_operand.vmem [shape: f32[8,16,56], index: 0, kind: input, shape index: {}]
  %s1 = inlined_call_operand.vmem [shape: f32[168,208], index: 1, kind: input, shape index: {}]
  %s2 = inlined_call_operand.vmem [shape: f32[1,208], index: 2, kind: input, shape index: {}]
  %s3 = inlined_call_operand.vmem [shape: f32[104,120], index: 3, kind: input, shape index: {}]
  %s4 = inlined_call_operand.vmem [shape: f32[300,132], index: 4, kind: input, shape index: {}]
  %s5 = inlined_call_operand.vmem [shape: f32[1,132], index: 5, kind: input, shape index: {}]
  %s6 = inlined_call_operand.vmem [shape: f32[132,120], index: 6, kind: input, shape index: {}]
  %s7 = inlined_call_operand.vmem [shape: f32[300,10], index: 7, kind: input, shape index: {}]
  %s8 = inlined_call_operand.vmem [shape: f32[1,10], index: 8, kind: input, shape index: {}]
  %s9 = inlined_call_operand.vmem [shape: f32[8,10], index: 9, kind: output, shape index: {}]
  %s10 = sld [smem:[#allocation0]]
  $region46: #{obd_forward.1} parent=0
    _
  %s12 = ssub.s32 1, %s10
  %s13 = scalar_select 0, %s12, %s10
  // Predicated region
  $region2: #{obd_forward.1} parent=0 // pred_check
    _
  $region3: #{obd_forward.1} parent=0 // pred_check_branch
    %15 = sbr.rel (0) target = $region5
  $region4: #{obd_forward.1} parent=0 // pred_region
    _
  $region5: #{obd_forward.1} parent=0 // pred_fallthru
    _
  // Predicated region
  $region6: #{obd_forward.1} parent=0 // pred_check
    _
  $region7: #{obd_forward.1} parent=0 // pred_check_branch
    %17 = sbr.rel (0) target = $region9
  $region8: #{obd_forward.1} parent=0 // pred_region
    _
  $region9: #{obd_forward.1} parent=0 // pred_fallthru
    _
  // Predicated region
  $region10: #{obd_forward.1} parent=0 // pred_check
    _
  $region11: #{obd_forward.1} parent=0 // pred_check_branch
    %19 = sbr.rel (0) target = $region13
  $region12: #{obd_forward.1} parent=0 // pred_region
    _
  $region13: #{obd_forward.1} parent=0 // pred_fallthru
    _
  // Predicated region
  $region14: #{obd_forward.1} parent=0 // pred_check
    _
  $region15: #{obd_forward.1} parent=0 // pred_check_branch
    %21 = sbr.rel (0) target = $region17
  $region16: #{obd_forward.1} parent=0 // pred_region
    _
  $region17: #{obd_forward.1} parent=0 // pred_fallthru
    _
  // Predicated region
  $region18: #{obd_forward.1} parent=0 // pred_check
    _
  $region19: #{obd_forward.1} parent=0 // pred_check_branch
    %23 = sbr.rel (0) target = $region21
  $region20: #{obd_forward.1} parent=0 // pred_region
    _
  $region21: #{obd_forward.1} parent=0 // pred_fallthru
    _
  // Predicated region
  $region22: #{obd_forward.1} parent=0 // pred_check
    _
  $region23: #{obd_forward.1} parent=0 // pred_check_branch
    %25 = sbr.rel (0) target = $region25
  $region24: #{obd_forward.1} parent=0 // pred_region
    _
  $region25: #{obd_forward.1} parent=0 // pred_fallthru
    _
  // Predicated region
  $region26: #{obd_forward.1} parent=0 // pred_check
    _
  $region27: #{obd_forward.1} parent=0 // pred_check_branch
    %27 = sbr.rel (0) target = $region29
  $region28: #{obd_forward.1} parent=0 // pred_region
    _
  $region29: #{obd_forward.1} parent=0 // pred_fallthru
    _
  // Predicated region
  $region30: #{obd_forward.1} parent=0 // pred_check
    _
  $region31: #{obd_forward.1} parent=0 // pred_check_branch
    %29 = sbr.rel (0) target = $region33
  $region32: #{obd_forward.1} parent=0 // pred_region
    _
  $region33: #{obd_forward.1} parent=0 // pred_fallthru
    _
  // Predicated region
  $region34: #{obd_forward.1} parent=0 // pred_check
    _
  $region35: #{obd_forward.1} parent=0 // pred_check_branch
    %31 = sbr.rel (0) target = $region37
  $region36: #{obd_forward.1} parent=0 // pred_region
    _
  $region37: #{obd_forward.1} parent=0 // pred_fallthru
    _
  %v32 = vld [vmem:[%s0] sm:$0xff]
  %v33 = vld [vmem:[%s0 + $0x8] sm:$0xff]
  %v34 = vld [vmem:[%s0 + $0x10] sm:$0xff]
  %v35 = vld [vmem:[%s0 + $0x18] sm:$0xff]
  %v36 = vld [vmem:[%s0 + $0x20] sm:$0xff]
  %v37 = vld [vmem:[%s0 + $0x28] sm:$0xff]
  %v38 = vld [vmem:[%s0 + $0x30] sm:$0xff]
  %v39 = vld [vmem:[%s0 + $0x38] sm:$0xff]
  %v40 = vld [vmem:[%s0 + $0x40] sm:$0xff]
  %v41 = vld [vmem:[%s0 + $0x48] sm:$0xff]
  %v42 = vld [vmem:[%s0 + $0x50] sm:$0xff]
  %v43 = vld [vmem:[%s0 + $0x58] sm:$0xff]
  %v44 = vld [vmem:[%s0 + $0x60] sm:$0xff]
  %v45 = vld [vmem:[%s0 + $0x68] sm:$0xff]
  %v46 = vld [vmem:[%s0 + $0x70] sm:$0xff]
  %v47 = vld [vmem:[%s0 + $0x78] sm:$0xff]
  %vm64 = vcmask 1040384
  %v65 = vrot.slane %v32, 7
  %v66 = vrot.slane %v33, 7
  %v67 = vsel %vm64, %v65, %v66
  %v68 = vrot.slane %v34, 7
  %v69 = vsel %vm64, %v66, %v68
  %v70 = vrot.slane %v35, 7
  %v71 = vsel %vm64, %v68, %v70
  %v72 = vrot.slane %v36, 7
  %v73 = vsel %vm64, %v70, %v72
  %v74 = vrot.slane %v37, 7
  %v75 = vsel %vm64, %v72, %v74
  %v76 = vrot.slane %v38, 7
  %v77 = vsel %vm64, %v74, %v76
  %v78 = vrot.slane %v39, 7
  %v79 = vsel %vm64, %v76, %v78
  %v80 = vrot.slane %v40, 7
  %v81 = vsel %vm64, %v78, %v80
  %v82 = vrot.slane %v41, 7
  %v83 = vsel %vm64, %v80, %v82
  %v84 = vrot.slane %v42, 7
  %v85 = vsel %vm64, %v82, %v84
  %v86 = vrot.slane %v43, 7
  %v87 = vsel %vm64, %v84, %v86
  %v88 = vrot.slane %v44, 7
  %v89 = vsel %vm64, %v86, %v88
  %v90 = vrot.slane %v45, 7
  %v91 = vsel %vm64, %v88, %v90
  %v92 = vrot.slane %v46, 7
  %v93 = vsel %vm64, %v90, %v92
  %v94 = vrot.slane %v47, 7
  %v95 = vsel %vm64, %v92, %v94
  %v112 = vsel %vm64, 0.0, %v65
  %vm113 = vcmask 1046528
  %v114 = vrot.slane %v32, 1
  %v115 = vrot.slane %v33, 1
  %v116 = vsel %vm113, %v114, %v115
  %v117 = vrot.slane %v34, 1
  %v118 = vsel %vm113, %v115, %v117
  %v119 = vrot.slane %v35, 1
  %v120 = vsel %vm113, %v117, %v119
  %v121 = vrot.slane %v36, 1
  %v122 = vsel %vm113, %v119, %v121
  %v123 = vrot.slane %v37, 1
  %v124 = vsel %vm113, %v121, %v123
  %v125 = vrot.slane %v38, 1
  %v126 = vsel %vm113, %v123, %v125
  %v127 = vrot.slane %v39, 1
  %v128 = vsel %vm113, %v125, %v127
  %v129 = vrot.slane %v40, 1
  %v130 = vsel %vm113, %v127, %v129
  %v131 = vrot.slane %v41, 1
  %v132 = vsel %vm113, %v129, %v131
  %v133 = vrot.slane %v42, 1
  %v134 = vsel %vm113, %v131, %v133
  %v135 = vrot.slane %v43, 1
  %v136 = vsel %vm113, %v133, %v135
  %v137 = vrot.slane %v44, 1
  %v138 = vsel %vm113, %v135, %v137
  %v139 = vrot.slane %v45, 1
  %v140 = vsel %vm113, %v137, %v139
  %v141 = vrot.slane %v46, 1
  %v142 = vsel %vm113, %v139, %v141
  %v143 = vrot.slane %v47, 1
  %v144 = vsel %vm113, %v141, %v143
  %v146 = vsel %vm113, %v143, 0.0
  %147 = vrot.lane.b32.xlu0 %v32, 56
  %v148 = vpop.permute.xlu0 %147
  %149 = vrot.lane.b32.xlu0 %v33, 56
  %v150 = vpop.permute.xlu0 %149
  %151 = vrot.lane.b32.xlu0 %v34, 56
  %v152 = vpop.permute.xlu0 %151
  %153 = vrot.lane.b32.xlu0 %v35, 56
  %v154 = vpop.permute.xlu0 %153
  %155 = vrot.lane.b32.xlu0 %v36, 56
  %v156 = vpop.permute.xlu0 %155
  %157 = vrot.lane.b32.xlu0 %v37, 56
  %v158 = vpop.permute.xlu0 %157
  %159 = vrot.lane.b32.xlu0 %v38, 56
  %v160 = vpop.permute.xlu0 %159
  %161 = vrot.lane.b32.xlu0 %v39, 56
  %v162 = vpop.permute.xlu0 %161
  %163 = vrot.lane.b32.xlu0 %v40, 56
  %v164 = vpop.permute.xlu0 %163
  %165 = vrot.lane.b32.xlu0 %v41, 56
  %v166 = vpop.permute.xlu0 %165
  %167 = vrot.lane.b32.xlu0 %v42, 56
  %v168 = vpop.permute.xlu0 %167
  %169 = vrot.lane.b32.xlu0 %v43, 56
  %v170 = vpop.permute.xlu0 %169
  %171 = vrot.lane.b32.xlu0 %v44, 56
  %v172 = vpop.permute.xlu0 %171
  %173 = vrot.lane.b32.xlu0 %v45, 56
  %v174 = vpop.permute.xlu0 %173
  %175 = vrot.lane.b32.xlu0 %v46, 56
  %v176 = vpop.permute.xlu0 %175
  %177 = vrot.lane.b32.xlu0 %v47, 56
  %v178 = vpop.permute.xlu0 %177
  %196 = vrot.lane.b32.xlu0 %v116, 112
  %v197 = vpop.permute.xlu0 %196
  %198 = vrot.lane.b32.xlu0 %v118, 112
  %v199 = vpop.permute.xlu0 %198
  %200 = vrot.lane.b32.xlu0 %v120, 112
  %v201 = vpop.permute.xlu0 %200
  %202 = vrot.lane.b32.xlu0 %v122, 112
  %v203 = vpop.permute.xlu0 %202
  %204 = vrot.lane.b32.xlu0 %v124, 112
  %v205 = vpop.permute.xlu0 %204
  %206 = vrot.lane.b32.xlu0 %v126, 112
  %v207 = vpop.permute.xlu0 %206
  %208 = vrot.lane.b32.xlu0 %v128, 112
  %v209 = vpop.permute.xlu0 %208
  %210 = vrot.lane.b32.xlu0 %v130, 112
  %v211 = vpop.permute.xlu0 %210
  %212 = vrot.lane.b32.xlu0 %v132, 112
  %v213 = vpop.permute.xlu0 %212
  %214 = vrot.lane.b32.xlu0 %v134, 112
  %v215 = vpop.permute.xlu0 %214
  %216 = vrot.lane.b32.xlu0 %v136, 112
  %v217 = vpop.permute.xlu0 %216
  %218 = vrot.lane.b32.xlu0 %v138, 112
  %v219 = vpop.permute.xlu0 %218
  %220 = vrot.lane.b32.xlu0 %v140, 112
  %v221 = vpop.permute.xlu0 %220
  %222 = vrot.lane.b32.xlu0 %v142, 112
  %v223 = vpop.permute.xlu0 %222
  %224 = vrot.lane.b32.xlu0 %v144, 112
  %v225 = vpop.permute.xlu0 %224
  %226 = vrot.lane.b32.xlu0 %v146, 112
  %v227 = vpop.permute.xlu0 %226
  %vm244 = vcmask 457728
  %v245 = vsel %vm244, %v112, %v148
  %v246 = vsel %vm244, %v67, %v150
  %v247 = vsel %vm244, %v69, %v152
  %v248 = vsel %vm244, %v71, %v154
  %v249 = vsel %vm244, %v73, %v156
  %v250 = vsel %vm244, %v75, %v158
  %v251 = vsel %vm244, %v77, %v160
  %v252 = vsel %vm244, %v79, %v162
  %v253 = vsel %vm244, %v81, %v164
  %v254 = vsel %vm244, %v83, %v166
  %v255 = vsel %vm244, %v85, %v168
  %v256 = vsel %vm244, %v87, %v170
  %v257 = vsel %vm244, %v89, %v172
  %v258 = vsel %vm244, %v91, %v174
  %v259 = vsel %vm244, %v93, %v176
  %v260 = vsel %vm244, %v95, %v178
  %vm261 = vcmask 916480
  %v262 = vsel %vm261, %v245, %v197
  %v263 = vsel %vm261, %v246, %v199
  %v264 = vsel %vm261, %v247, %v201
  %v265 = vsel %vm261, %v248, %v203
  %v266 = vsel %vm261, %v249, %v205
  %v267 = vsel %vm261, %v250, %v207
  %v268 = vsel %vm261, %v251, %v209
  %v269 = vsel %vm261, %v252, %v211
  %v270 = vsel %vm261, %v253, %v213
  %v271 = vsel %vm261, %v254, %v215
  %v272 = vsel %vm261, %v255, %v217
  %v273 = vsel %vm261, %v256, %v219
  %v274 = vsel %vm261, %v257, %v221
  %v275 = vsel %vm261, %v258, %v223
  %v276 = vsel %vm261, %v259, %v225
  %v277 = vsel %vm261, %v260, %v227
  %v278 = vld [vmem:[%s1] sm:$0xff]
  %v279 = vld [vmem:[%s1 + $0x8] sm:$0xff]
  %v280 = vld [vmem:[%s1 + $0x10] sm:$0xff]
  %v281 = vld [vmem:[%s1 + $0x18] sm:$0xff]
  %v282 = vld [vmem:[%s1 + $0x20] sm:$0xff]
  %v283 = vld [vmem:[%s1 + $0x28] sm:$0xff]
  %v284 = vld [vmem:[%s1 + $0x30] sm:$0xff]
  %v285 = vld [vmem:[%s1 + $0x38] sm:$0xff]
  %v286 = vld [vmem:[%s1 + $0x40] sm:$0xff]
  %v287 = vld [vmem:[%s1 + $0x48] sm:$0xff]
  %v288 = vld [vmem:[%s1 + $0x50] sm:$0xff]
  %v289 = vld [vmem:[%s1 + $0x58] sm:$0xff]
  %v290 = vld [vmem:[%s1 + $0x60] sm:$0xff]
  %v291 = vld [vmem:[%s1 + $0x68] sm:$0xff]
  %v292 = vld [vmem:[%s1 + $0x70] sm:$0xff]
  %v293 = vld [vmem:[%s1 + $0x78] sm:$0xff]
  %v294 = vld [vmem:[%s1 + $0x80] sm:$0xff]
  %v295 = vld [vmem:[%s1 + $0x88] sm:$0xff]
  %v296 = vld [vmem:[%s1 + $0x90] sm:$0xff]
  %v297 = vld [vmem:[%s1 + $0x98] sm:$0xff]
  %v298 = vld [vmem:[%s1 + $0xa0] sm:$0xff]
  %v299 = vld [vmem:[%s1 + $0xa8] sm:$0xff]
  %v300 = vld [vmem:[%s1 + $0xb0] sm:$0xff]
  %v301 = vld [vmem:[%s1 + $0xb8] sm:$0xff]
  %v302 = vld [vmem:[%s1 + $0xc0] sm:$0xff]
  %v303 = vld [vmem:[%s1 + $0xc8] sm:$0xff]
  %v304 = vld [vmem:[%s1 + $0xd0] sm:$0xff]
  %v305 = vld [vmem:[%s1 + $0xd8] sm:$0xff]
  %v306 = vld [vmem:[%s1 + $0xe0] sm:$0xff]
  %v307 = vld [vmem:[%s1 + $0xe8] sm:$0xff]
  %v308 = vld [vmem:[%s1 + $0xf0] sm:$0xff]
  %v309 = vld [vmem:[%s1 + $0xf8] sm:$0xff]
  %v310 = vld [vmem:[%s1 + $0x100] sm:$0xff]
  %v311 = vld [vmem:[%s1 + $0x108] sm:$0xff]
  %v312 = vld [vmem:[%s1 + $0x110] sm:$0xff]
  %v313 = vld [vmem:[%s1 + $0x118] sm:$0xff]
  %v314 = vld [vmem:[%s1 + $0x120] sm:$0xff]
  %v315 = vld [vmem:[%s1 + $0x128] sm:$0xff]
  %v316 = vld [vmem:[%s1 + $0x130] sm:$0xff]
  %v317 = vld [vmem:[%s1 + $0x138] sm:$0xff]
  %v318 = vld [vmem:[%s1 + $0x140] sm:$0xff]
  %v319 = vld [vmem:[%s1 + $0x148] sm:$0xff]
  %v320 = vld [vmem:[%s2] sm:$0x3]
  %v322 = vlaneseq
  %v323 = vshrl.u32 %v322, 7
  %v324 = vsub.s32 0, %v323
  %v325 = vrot.slane %v320, %v324
  %v326 = vlaneseq
  %v327 = vshrl.u32 %v326, 7
  %v328 = vsub.s32 1, %v327
  %v329 = vrot.slane %v320, %v328
  %vm332 = vcmask 326656
  %v333 = vsel %vm332, %v197, 0
  %v335 = vsel %vm332, %v199, 0
  %v337 = vsel %vm332, %v201, 0
  %v339 = vsel %vm332, %v203, 0
  %v341 = vsel %vm332, %v205, 0
  %v343 = vsel %vm332, %v207, 0
  %v345 = vsel %vm332, %v209, 0
  %v347 = vsel %vm332, %v211, 0
  %v349 = vsel %vm332, %v213, 0
  %v351 = vsel %vm332, %v215, 0
  %v353 = vsel %vm332, %v217, 0
  %v355 = vsel %vm332, %v219, 0
  %v357 = vsel %vm332, %v221, 0
  %v359 = vsel %vm332, %v223, 0
  %v361 = vsel %vm332, %v225, 0
  %v363 = vsel %vm332, %v227, 0
  %365 = vmatprep.subr.mxu0 %v279
  %366 = vmatpush1.msra.mxu0 %v278
  %367 = vmatprep.subr.mxu0 %v281
  %368 = vmatpush1.msra.mxu0 %v280
  %369 = vmatprep.subr.mxu0 %v283
  %370 = vmatpush1.msra.mxu0 %v282
  %371 = vmatprep.subr.mxu0 %v285
  %372 = vmatpush1.msra.mxu0 %v284
  %373 = vmatprep.subr.mxu0 %v287
  %374 = vmatpush1.msra.mxu0 %v286
  %375 = vmatprep.subr.mxu0 %v289
  %376 = vmatpush1.msra.mxu0 %v288
  %377 = vmatprep.subr.mxu0 %v291
  %378 = vmatpush1.msra.mxu0 %v290
  %379 = vmatprep.subr.mxu0 %v293
  %380 = vmatpush1.msra.mxu0 %v292
  %381 = vmatprep.subr.mxu0 %v295
  %382 = vmatpush1.msra.mxu0 %v294
  %383 = vmatprep.subr.mxu0 %v297
  %384 = vmatpush1.msra.mxu0 %v296
  %385 = vmatprep.subr.mxu0 %v299
  %386 = vmatpush1.msra.mxu0 %v298
  %387 = vmatprep.subr.mxu0 %v301
  %388 = vmatpush1.msra.mxu0 %v300
  %389 = vmatprep.subr.mxu0 %v303
  %390 = vmatpush1.msra.mxu0 %v302
  %391 = vmatprep.subr.mxu0 %v305
  %392 = vmatpush1.msra.mxu0 %v304
  %393 = vmatprep.subr.mxu0 %v307
  %394 = vmatpush1.msra.mxu0 %v306
  %395 = vmatprep.subr.mxu0 %v309
  %396 = vmatpush1.msra.mxu0 %v308
  %397 = vmatprep.subr.mxu0 %v311
  %398 = vmatpush1.msra.mxu0 %v310
  %399 = vmatprep.subr.mxu0 %v313
  %400 = vmatpush1.msra.mxu0 %v312
  %401 = vmatprep.subr.mxu0 %v315
  %402 = vmatpush1.msra.mxu0 %v314
  %403 = vmatprep.subr.mxu0 %v317
  %404 = vmatpush1.msra.mxu0 %v316
  %405 = vmatprep.subr.mxu0 %v319
  %406 = vmatpush1.msra.mxu0 %v318
  %407 = vmatprep.subr.mxu0 0.0
  %408 = vmatpush1.msra.mxu0 0.0
  %409 = vmatprep.subr.mxu0 0.0
  %410 = vmatpush1.msra.mxu0 0.0
  %411 = vmatprep.subr.mxu0 0.0
  %412 = vmatpush1.msra.mxu0 0.0
  %413 = vmatprep.subr.mxu0 0.0
  %414 = vmatpush1.msra.mxu0 0.0
  %415 = vmatprep.subr.mxu0 0.0
  %416 = vmatpush1.msra.mxu0 0.0
  %417 = vmatprep.subr.mxu0 0.0
  %418 = vmatpush1.msra.mxu0 0.0
  %419 = vmatprep.subr.mxu0 0.0
  %420 = vmatpush1.msra.mxu0 0.0
  %421 = vmatprep.subr.mxu0 0.0
  %422 = vmatpush1.msra.mxu0 0.0
  %423 = vmatprep.subr.mxu0 0.0
  %424 = vmatpush1.msra.mxu0 0.0
  %425 = vmatprep.subr.mxu0 0.0
  %426 = vmatpush1.msra.mxu0 0.0
  %427 = vmatprep.subr.mxu0 0.0
  %428 = vmatpush1.msra.mxu0 0.0
  %429 = vmatprep.mubr.f32.mxu0 %v333
  %430 = vmatmul.mubr.f32.gmra.mrb[0].mxu0 %v262
  %v431 = vpop.f32.mrb[0].mxu0
  %v432 = vadd.f32 %v325, %v431
  %v433 = vpop.f32.mrb[0].mxu0
  %v434 = vadd.f32 %v329, %v433
  %435 = vmatprep.mubr.f32.mxu0 %v335
  %436 = vmatmul.mubr.f32.gmra.mrb[0].mxu0 %v263
  %v437 = vpop.f32.mrb[0].mxu0
  %v438 = vadd.f32 %v325, %v437
  %v439 = vpop.f32.mrb[0].mxu0
  %v440 = vadd.f32 %v329, %v439
  %441 = vmatprep.mubr.f32.mxu0 %v337
  %442 = vmatmul.mubr.f32.gmra.mrb[0].mxu0 %v264
  %v443 = vpop.f32.mrb[0].mxu0
  %v444 = vadd.f32 %v325, %v443
  %v445 = vpop.f32.mrb[0].mxu0
  %v446 = vadd.f32 %v329, %v445
  %447 = vmatprep.mubr.f32.mxu0 %v339
  %448 = vmatmul.mubr.f32.gmra.mrb[0].mxu0 %v265
  %v449 = vpop.f32.mrb[0].mxu0
  %v450 = vadd.f32 %v325, %v449
  %v451 = vpop.f32.mrb[0].mxu0
  %v452 = vadd.f32 %v329, %v451
  %453 = vmatprep.mubr.f32.mxu0 %v341
  %454 = vmatmul.mubr.f32.gmra.mrb[0].mxu0 %v266
  %v455 = vpop.f32.mrb[0].mxu0
  %v456 = vadd.f32 %v325, %v455
  %v457 = vpop.f32.mrb[0].mxu0
  %v458 = vadd.f32 %v329, %v457
  %459 = vmatprep.mubr.f32.mxu0 %v343
  %460 = vmatmul.mubr.f32.gmra.mrb[0].mxu0 %v267
  %v461 = vpop.f32.mrb[0].mxu0
  %v462 = vadd.f32 %v325, %v461
  %v463 = vpop.f32.mrb[0].mxu0
  %v464 = vadd.f32 %v329, %v463
  %465 = vmatprep.mubr.f32.mxu0 %v345
  %466 = vmatmul.mubr.f32.gmra.mrb[0].mxu0 %v268
  %v467 = vpop.f32.mrb[0].mxu0
  %v468 = vadd.f32 %v325, %v467
  %v469 = vpop.f32.mrb[0].mxu0
  %v470 = vadd.f32 %v329, %v469
  %471 = vmatprep.mubr.f32.mxu0 %v347
  %472 = vmatmul.mubr.f32.gmra.mrb[0].mxu0 %v269
  %v473 = vpop.f32.mrb[0].mxu0
  %v474 = vadd.f32 %v325, %v473
  %v475 = vpop.f32.mrb[0].mxu0
  %v476 = vadd.f32 %v329, %v475
  %477 = vmatprep.mubr.f32.mxu0 %v349
  %478 = vmatmul.mubr.f32.gmra.mrb[0].mxu0 %v270
  %v479 = vpop.f32.mrb[0].mxu0
  %v480 = vadd.f32 %v325, %v479
  %v481 = vpop.f32.mrb[0].mxu0
  %v482 = vadd.f32 %v329, %v481
  %483 = vmatprep.mubr.f32.mxu0 %v351
  %484 = vmatmul.mubr.f32.gmra.mrb[0].mxu0 %v271
  %v485 = vpop.f32.mrb[0].mxu0
  %v486 = vadd.f32 %v325, %v485
  %v487 = vpop.f32.mrb[0].mxu0
  %v488 = vadd.f32 %v329, %v487
  %489 = vmatprep.mubr.f32.mxu0 %v353
  %490 = vmatmul.mubr.f32.gmra.mrb[0].mxu0 %v272
  %v491 = vpop.f32.mrb[0].mxu0
  %v492 = vadd.f32 %v325, %v491
  %v493 = vpop.f32.mrb[0].mxu0
  %v494 = vadd.f32 %v329, %v493
  %495 = vmatprep.mubr.f32.mxu0 %v355
  %496 = vmatmul.mubr.f32.gmra.mrb[0].mxu0 %v273
  %v497 = vpop.f32.mrb[0].mxu0
  %v498 = vadd.f32 %v325, %v497
  %v499 = vpop.f32.mrb[0].mxu0
  %v500 = vadd.f32 %v329, %v499
  %501 = vmatprep.mubr.f32.mxu0 %v357
  %502 = vmatmul.mubr.f32.gmra.mrb[0].mxu0 %v274
  %v503 = vpop.f32.mrb[0].mxu0
  %v504 = vadd.f32 %v325, %v503
  %v505 = vpop.f32.mrb[0].mxu0
  %v506 = vadd.f32 %v329, %v505
  %507 = vmatprep.mubr.f32.mxu0 %v359
  %508 = vmatmul.mubr.f32.gmra.mrb[0].mxu0 %v275
  %v509 = vpop.f32.mrb[0].mxu0
  %v510 = vadd.f32 %v325, %v509
  %v511 = vpop.f32.mrb[0].mxu0
  %v512 = vadd.f32 %v329, %v511
  %513 = vmatprep.mubr.f32.mxu0 %v361
  %514 = vmatmul.mubr.f32.gmra.mrb[0].mxu0 %v276
  %v515 = vpop.f32.mrb[0].mxu0
  %v516 = vadd.f32 %v325, %v515
  %v517 = vpop.f32.mrb[0].mxu0
  %v518 = vadd.f32 %v329, %v517
  %519 = vmatprep.mubr.f32.mxu0 %v363
  %520 = vmatmul.mubr.f32.gmra.mrb[0].mxu0 %v277
  %v521 = vpop.f32.mrb[0].mxu0
  %v522 = vadd.f32 %v325, %v521
  %v523 = vpop.f32.mrb[0].mxu0
  %v524 = vadd.f32 %v329, %v523
  %525 = vdwg.mxu0
  %vm526 = vcmp.ge.f32.partialorder %v432, 0.0
  %vm527 = vcmp.ge.f32.partialorder %v434, 0.0
  %vm528 = vcmp.ge.f32.partialorder %v438, 0.0
  %vm529 = vcmp.ge.f32.partialorder %v440, 0.0
  %vm530 = vcmp.ge.f32.partialorder %v444, 0.0
  %vm531 = vcmp.ge.f32.partialorder %v446, 0.0
  %vm532 = vcmp.ge.f32.partialorder %v450, 0.0
  %vm533 = vcmp.ge.f32.partialorder %v452, 0.0
  %vm534 = vcmp.ge.f32.partialorder %v456, 0.0
  %vm535 = vcmp.ge.f32.partialorder %v458, 0.0
  %vm536 = vcmp.ge.f32.partialorder %v462, 0.0
  %vm537 = vcmp.ge.f32.partialorder %v464, 0.0
  %vm538 = vcmp.ge.f32.partialorder %v468, 0.0
  %vm539 = vcmp.ge.f32.partialorder %v470, 0.0
  %vm540 = vcmp.ge.f32.partialorder %v474, 0.0
  %vm541 = vcmp.ge.f32.partialorder %v476, 0.0
  %vm542 = vcmp.ge.f32.partialorder %v480, 0.0
  %vm543 = vcmp.ge.f32.partialorder %v482, 0.0
  %vm544 = vcmp.ge.f32.partialorder %v486, 0.0
  %vm545 = vcmp.ge.f32.partialorder %v488, 0.0
  %vm546 = vcmp.ge.f32.partialorder %v492, 0.0
  %vm547 = vcmp.ge.f32.partialorder %v494, 0.0
  %vm548 = vcmp.ge.f32.partialorder %v498, 0.0
  %vm549 = vcmp.ge.f32.partialorder %v500, 0.0
  %vm550 = vcmp.ge.f32.partialorder %v504, 0.0
  %vm551 = vcmp.ge.f32.partialorder %v506, 0.0
  %vm552 = vcmp.ge.f32.partialorder %v510, 0.0
  %vm553 = vcmp.ge.f32.partialorder %v512, 0.0
  %vm554 = vcmp.ge.f32.partialorder %v516, 0.0
  %vm555 = vcmp.ge.f32.partialorder %v518, 0.0
  %vm556 = vcmp.ge.f32.partialorder %v522, 0.0
  %vm557 = vcmp.ge.f32.partialorder %v524, 0.0
  %v558 = vmul.f32 %v432, 0.01
  %v559 = vmul.f32 %v434, 0.01
  %v560 = vmul.f32 %v438, 0.01
  %v561 = vmul.f32 %v440, 0.01
  %v562 = vmul.f32 %v444, 0.01
  %v563 = vmul.f32 %v446, 0.01
  %v564 = vmul.f32 %v450, 0.01
  %v565 = vmul.f32 %v452, 0.01
  %v566 = vmul.f32 %v456, 0.01
  %v567 = vmul.f32 %v458, 0.01
  %v568 = vmul.f32 %v462, 0.01
  %v569 = vmul.f32 %v464, 0.01
  %v570 = vmul.f32 %v468, 0.01
  %v571 = vmul.f32 %v470, 0.01
  %v572 = vmul.f32 %v474, 0.01
  %v573 = vmul.f32 %v476, 0.01
  %v574 = vmul.f32 %v480, 0.01
  %v575 = vmul.f32 %v482, 0.01
  %v576 = vmul.f32 %v486, 0.01
  %v577 = vmul.f32 %v488, 0.01
  %v578 = vmul.f32 %v492, 0.01
  %v579 = vmul.f32 %v494, 0.01
  %v580 = vmul.f32 %v498, 0.01
  %v581 = vmul.f32 %v500, 0.01
  %v582 = vmul.f32 %v504, 0.01
  %v583 = vmul.f32 %v506, 0.01
  %v584 = vmul.f32 %v510, 0.01
  %v585 = vmul.f32 %v512, 0.01
  %v586 = vmul.f32 %v516, 0.01
  %v587 = vmul.f32 %v518, 0.01
  %v588 = vmul.f32 %v522, 0.01
  %v589 = vmul.f32 %v524, 0.01
  %v590 = vsel %vm526, %v432, %v558
  %v591 = vsel %vm527, %v434, %v559
  %v592 = vsel %vm528, %v438, %v560
  %v593 = vsel %vm529, %v440, %v561
  %v594 = vsel %vm530, %v444, %v562
  %v595 = vsel %vm531, %v446, %v563
  %v596 = vsel %vm532, %v450, %v564
  %v597 = vsel %vm533, %v452, %v565
  %v598 = vsel %vm534, %v456, %v566
  %v599 = vsel %vm535, %v458, %v567
  %v600 = vsel %vm536, %v462, %v568
  %v601 = vsel %vm537, %v464, %v569
  %v602 = vsel %vm538, %v468, %v570
  %v603 = vsel %vm539, %v470, %v571
  %v604 = vsel %vm540, %v474, %v572
  %v605 = vsel %vm541, %v476, %v573
  %v606 = vsel %vm542, %v480, %v574
  %v607 = vsel %vm543, %v482, %v575
  %v608 = vsel %vm544, %v486, %v576
  %v609 = vsel %vm545, %v488, %v577
  %v610 = vsel %vm546, %v492, %v578
  %v611 = vsel %vm547, %v494, %v579
  %v612 = vsel %vm548, %v498, %v580
  %v613 = vsel %vm549, %v500, %v581
  %v614 = vsel %vm550, %v504, %v582
  %v615 = vsel %vm551, %v506, %v583
  %v616 = vsel %vm552, %v510, %v584
  %v617 = vsel %vm553, %v512, %v585
  %v618 = vsel %vm554, %v516, %v586
  %v619 = vsel %vm555, %v518, %v587
  %v620 = vsel %vm556, %v522, %v588
  %v621 = vsel %vm557, %v524, %v589
  %654 = vrot.lane.b32.xlu0 %v590, 24
  %v655 = vpop.permute.xlu0 %654
  %656 = vrot.lane.b32.xlu0 %v591, 24
  %v657 = vpop.permute.xlu0 %656
  %658 = vrot.lane.b32.xlu0 %v592, 24
  %v659 = vpop.permute.xlu0 %658
  %660 = vrot.lane.b32.xlu0 %v593, 24
  %v661 = vpop.permute.xlu0 %660
  %662 = vrot.lane.b32.xlu0 %v594, 24
  %v663 = vpop.permute.xlu0 %662
  %664 = vrot.lane.b32.xlu0 %v595, 24
  %v665 = vpop.permute.xlu0 %664
  %666 = vrot.lane.b32.xlu0 %v596, 24
  %v667 = vpop.permute.xlu0 %666
  %668 = vrot.lane.b32.xlu0 %v597, 24
  %v669 = vpop.permute.xlu0 %668
  %670 = vrot.lane.b32.xlu0 %v598, 24
  %v671 = vpop.permute.xlu0 %670
  %672 = vrot.lane.b32.xlu0 %v599, 24
  %v673 = vpop.permute.xlu0 %672
  %674 = vrot.lane.b32.xlu0 %v600, 24
  %v675 = vpop.permute.xlu0 %674
  %676 = vrot.lane.b32.xlu0 %v601, 24
  %v677 = vpop.permute.xlu0 %676
  %678 = vrot.lane.b32.xlu0 %v602, 24
  %v679 = vpop.permute.xlu0 %678
  %680 = vrot.lane.b32.xlu0 %v603, 24
  %v681 = vpop.permute.xlu0 %680
  %682 = vrot.lane.b32.xlu0 %v604, 24
  %v683 = vpop.permute.xlu0 %682
  %684 = vrot.lane.b32.xlu0 %v605, 24
  %v685 = vpop.permute.xlu0 %684
  %686 = vrot.lane.b32.xlu0 %v606, 24
  %v687 = vpop.permute.xlu0 %686
  %688 = vrot.lane.b32.xlu0 %v607, 24
  %v689 = vpop.permute.xlu0 %688
  %690 = vrot.lane.b32.xlu0 %v608, 24
  %v691 = vpop.permute.xlu0 %690
  %692 = vrot.lane.b32.xlu0 %v609, 24
  %v693 = vpop.permute.xlu0 %692
  %694 = vrot.lane.b32.xlu0 %v610, 24
  %v695 = vpop.permute.xlu0 %694
  %696 = vrot.lane.b32.xlu0 %v611, 24
  %v697 = vpop.permute.xlu0 %696
  %698 = vrot.lane.b32.xlu0 %v612, 24
  %v699 = vpop.permute.xlu0 %698
  %700 = vrot.lane.b32.xlu0 %v613, 24
  %v701 = vpop.permute.xlu0 %700
  %702 = vrot.lane.b32.xlu0 %v614, 24
  %v703 = vpop.permute.xlu0 %702
  %704 = vrot.lane.b32.xlu0 %v615, 24
  %v705 = vpop.permute.xlu0 %704
  %706 = vrot.lane.b32.xlu0 %v616, 24
  %v707 = vpop.permute.xlu0 %706
  %708 = vrot.lane.b32.xlu0 %v617, 24
  %v709 = vpop.permute.xlu0 %708
  %710 = vrot.lane.b32.xlu0 %v618, 24
  %v711 = vpop.permute.xlu0 %710
  %712 = vrot.lane.b32.xlu0 %v619, 24
  %v713 = vpop.permute.xlu0 %712
  %714 = vrot.lane.b32.xlu0 %v620, 24
  %v715 = vpop.permute.xlu0 %714
  %716 = vrot.lane.b32.xlu0 %v621, 24
  %v717 = vpop.permute.xlu0 %716
  %vm718 = vcmask 195584
  %v719 = vsel %vm718, %v655, %v657
  %v720 = vsel %vm718, %v659, %v661
  %v721 = vsel %vm718, %v663, %v665
  %v722 = vsel %vm718, %v667, %v669
  %v723 = vsel %vm718, %v671, %v673
  %v724 = vsel %vm718, %v675, %v677
  %v725 = vsel %vm718, %v679, %v681
  %v726 = vsel %vm718, %v683, %v685
  %v727 = vsel %vm718, %v687, %v689
  %v728 = vsel %vm718, %v691, %v693
  %v729 = vsel %vm718, %v695, %v697
  %v730 = vsel %vm718, %v699, %v701
  %v731 = vsel %vm718, %v703, %v705
  %v732 = vsel %vm718, %v707, %v709
  %v733 = vsel %vm718, %v711, %v713
  %v734 = vsel %vm718, %v715, %v717
  %v751 = vmax.f32 %v590, %v719
  %v752 = vmax.f32 %v592, %v720
  %v753 = vmax.f32 %v594, %v721
  %v754 = vmax.f32 %v596, %v722
  %v755 = vmax.f32 %v598, %v723
  %v756 = vmax.f32 %v600, %v724
  %v757 = vmax.f32 %v602, %v725
  %v758 = vmax.f32 %v604, %v726
  %v759 = vmax.f32 %v606, %v727
  %v760 = vmax.f32 %v608, %v728
  %v761 = vmax.f32 %v610, %v729
  %v762 = vmax.f32 %v612, %v730
  %v763 = vmax.f32 %v614, %v731
  %v764 = vmax.f32 %v616, %v732
  %v765 = vmax.f32 %v618, %v733
  %v766 = vmax.f32 %v620, %v734
  %v767 = vld [vmem:[%s3] sm:$0xff]
  %v768 = vld [vmem:[%s3 + $0x8] sm:$0xff]
  %v769 = vld [vmem:[%s3 + $0x10] sm:$0xff]
  %v770 = vld [vmem:[%s3 + $0x18] sm:$0xff]
  %v771 = vld [vmem:[%s3 + $0x20] sm:$0xff]
  %v772 = vld [vmem:[%s3 + $0x28] sm:$0xff]
  %v773 = vld [vmem:[%s3 + $0x30] sm:$0xff]
  %v774 = vld [vmem:[%s3 + $0x38] sm:$0xff]
  %v775 = vld [vmem:[%s3 + $0x40] sm:$0xff]
  %v776 = vld [vmem:[%s3 + $0x48] sm:$0xff]
  %v777 = vld [vmem:[%s3 + $0x50] sm:$0xff]
  %v778 = vld [vmem:[%s3 + $0x58] sm:$0xff]
  %v779 = vld [vmem:[%s3 + $0x60] sm:$0xff]
  %vm780 = vcmask 850944
  %v782 = vsel %vm780, %v751, 0
  %v785 = vsel %vm780, %v752, 0
  %v788 = vsel %vm780, %v753, 0
  %v791 = vsel %vm780, %v754, 0
  %v794 = vsel %vm780, %v755, 0
  %v797 = vsel %vm780, %v756, 0
  %v800 = vsel %vm780, %v757, 0
  %v803 = vsel %vm780, %v758, 0
  %v806 = vsel %vm780, %v759, 0
  %v809 = vsel %vm780, %v760, 0
  %v812 = vsel %vm780, %v761, 0
  %v815 = vsel %vm780, %v762, 0
  %v818 = vsel %vm780, %v763, 0
  %v821 = vsel %vm780, %v764, 0
  %v824 = vsel %vm780, %v765, 0
  %v827 = vsel %vm780, %v766, 0
  %829 = vmatprep.subr.mxu0 0.0
  %830 = vmatpush1.msra.mxu0 %v767
  %831 = vmatprep.subr.mxu0 0.0
  %832 = vmatpush1.msra.mxu0 %v768
  %833 = vmatprep.subr.mxu0 0.0
  %834 = vmatpush1.msra.mxu0 %v769
  %835 = vmatprep.subr.mxu0 0.0
  %836 = vmatpush1.msra.mxu0 %v770
  %837 = vmatprep.subr.mxu0 0.0
  %838 = vmatpush1.msra.mxu0 %v771
  %839 = vmatprep.subr.mxu0 0.0
  %840 = vmatpush1.msra.mxu0 %v772
  %841 = vmatprep.subr.mxu0 0.0
  %842 = vmatpush1.msra.mxu0 %v773
  %843 = vmatprep.subr.mxu0 0.0
  %844 = vmatpush1.msra.mxu0 %v774
  %845 = vmatprep.subr.mxu0 0.0
  %846 = vmatpush1.msra.mxu0 %v775
  %847 = vmatprep.subr.mxu0 0.0
  %848 = vmatpush1.msra.mxu0 %v776
  %849 = vmatprep.subr.mxu0 0.0
  %850 = vmatpush1.msra.mxu0 %v777
  %851 = vmatprep.subr.mxu0 0.0
  %852 = vmatpush1.msra.mxu0 %v778
  %853 = vmatprep.subr.mxu0 0.0
  %854 = vmatpush1.msra.mxu0 %v779
  %855 = vmatprep.subr.mxu0 0.0
  %856 = vmatpush1.msra.mxu0 0.0
  %857 = vmatprep.subr.mxu0 0.0
  %858 = vmatpush1.msra.mxu0 0.0
  %859 = vmatprep.subr.mxu0 0.0
  %860 = vmatpush1.msra.mxu0 0.0
  %861 = vmatprep.subr.mxu0 0.0
  %862 = vmatpush1.msra.mxu0 0.0
  %863 = vmatprep.subr.mxu0 0.0
  %864 = vmatpush1.msra.mxu0 0.0
  %865 = vmatprep.subr.mxu0 0.0
  %866 = vmatpush1.msra.mxu0 0.0
  %867 = vmatprep.subr.mxu0 0.0
  %868 = vmatpush1.msra.mxu0 0.0
  %869 = vmatprep.subr.mxu0 0.0
  %870 = vmatpush1.msra.mxu0 0.0
  %871 = vmatprep.subr.mxu0 0.0
  %872 = vmatpush1.msra.mxu0 0.0
  %873 = vmatprep.subr.mxu0 0.0
  %874 = vmatpush1.msra.mxu0 0.0
  %875 = vmatprep.subr.mxu0 0.0
  %876 = vmatpush1.msra.mxu0 0.0
  %877 = vmatprep.subr.mxu0 0.0
  %878 = vmatpush1.msra.mxu0 0.0
  %879 = vmatprep.subr.mxu0 0.0
  %880 = vmatpush1.msra.mxu0 0.0
  %881 = vmatprep.subr.mxu0 0.0
  %882 = vmatpush1.msra.mxu0 0.0
  %883 = vmatprep.subr.mxu0 0.0
  %884 = vmatpush1.msra.mxu0 0.0
  %885 = vmatprep.subr.mxu0 0.0
  %886 = vmatpush1.msra.mxu0 0.0
  %887 = vmatprep.subr.mxu0 0.0
  %888 = vmatpush1.msra.mxu0 0.0
  %889 = vmatprep.subr.mxu0 0.0
  %890 = vmatpush1.msra.mxu0 0.0
  %891 = vmatprep.subr.mxu0 0.0
  %892 = vmatpush1.msra.mxu0 0.0
  %893 = vmatprep.mubr.f32.mxu0 0.0
  %894 = vmatmul.mubr.f32.gmra.mrb[0].mxu0 %v782
  %v895 = vpop.f32.mrb[0].mxu0
  %v896 = vadd.f32 0.0, %v895
  %v897 = vpop.f32.mrb[0].mxu0
  %898 = vmatprep.mubr.f32.mxu0 0.0
  %899 = vmatmul.mubr.f32.gmra.mrb[0].mxu0 %v785
  %v900 = vpop.f32.mrb[0].mxu0
  %v901 = vadd.f32 0.0, %v900
  %v902 = vpop.f32.mrb[0].mxu0
  %903 = vmatprep.mubr.f32.mxu0 0.0
  %904 = vmatmul.mubr.f32.gmra.mrb[0].mxu0 %v788
  %v905 = vpop.f32.mrb[0].mxu0
  %v906 = vadd.f32 0.0, %v905
  %v907 = vpop.f32.mrb[0].mxu0
  %908 = vmatprep.mubr.f32.mxu0 0.0
  %909 = vmatmul.mubr.f32.gmra.mrb[0].mxu0 %v791
  %v910 = vpop.f32.mrb[0].mxu0
  %v911 = vadd.f32 0.0, %v910
  %v912 = vpop.f32.mrb[0].mxu0
  %913 = vmatprep.mubr.f32.mxu0 0.0
  %914 = vmatmul.mubr.f32.gmra.mrb[0].mxu0 %v794
  %v915 = vpop.f32.mrb[0].mxu0
  %v916 = vadd.f32 0.0, %v915
  %v917 = vpop.f32.mrb[0].mxu0
  %918 = vmatprep.mubr.f32.mxu0 0.0
  %919 = vmatmul.mubr.f32.gmra.mrb[0].mxu0 %v797
  %v920 = vpop.f32.mrb[0].mxu0
  %v921 = vadd.f32 0.0, %v920
  %v922 = vpop.f32.mrb[0].mxu0
  %923 = vmatprep.mubr.f32.mxu0 0.0
  %924 = vmatmul.mubr.f32.gmra.mrb[0].mxu0 %v800
  %v925 = vpop.f32.mrb[0].mxu0
  %v926 = vadd.f32 0.0, %v925
  %v927 = vpop.f32.mrb[0].mxu0
  %928 = vmatprep.mubr.f32.mxu0 0.0
  %929 = vmatmul.mubr.f32.gmra.mrb[0].mxu0 %v803
  %v930 = vpop.f32.mrb[0].mxu0
  %v931 = vadd.f32 0.0, %v930
  %v932 = vpop.f32.mrb[0].mxu0
  %933 = vmatprep.mubr.f32.mxu0 0.0
  %934 = vmatmul.mubr.f32.gmra.mrb[0].mxu0 %v806
  %v935 = vpop.f32.mrb[0].mxu0
  %v936 = vadd.f32 0.0, %v935
  %v937 = vpop.f32.mrb[0].mxu0
  %938 = vmatprep.mubr.f32.mxu0 0.0
  %939 = vmatmul.mubr.f32.gmra.mrb[0].mxu0 %v809
  %v940 = vpop.f32.mrb[0].mxu0
  %v941 = vadd.f32 0.0, %v940
  %v942 = vpop.f32.mrb[0].mxu0
  %943 = vmatprep.mubr.f32.mxu0 0.0
  %944 = vmatmul.mubr.f32.gmra.mrb[0].mxu0 %v812
  %v945 = vpop.f32.mrb[0].mxu0
  %v946 = vadd.f32 0.0, %v945
  %v947 = vpop.f32.mrb[0].mxu0
  %948 = vmatprep.mubr.f32.mxu0 0.0
  %949 = vmatmul.mubr.f32.gmra.mrb[0].mxu0 %v815
  %v950 = vpop.f32.mrb[0].mxu0
  %v951 = vadd.f32 0.0, %v950
  %v952 = vpop.f32.mrb[0].mxu0
  %953 = vmatprep.mubr.f32.mxu0 0.0
  %954 = vmatmul.mubr.f32.gmra.mrb[0].mxu0 %v818
  %v955 = vpop.f32.mrb[0].mxu0
  %v956 = vadd.f32 0.0, %v955
  %v957 = vpop.f32.mrb[0].mxu0
  %958 = vmatprep.mubr.f32.mxu0 0.0
  %959 = vmatmul.mubr.f32.gmra.mrb[0].mxu0 %v821
  %v960 = vpop.f32.mrb[0].mxu0
  %v961 = vadd.f32 0.0, %v960
  %v962 = vpop.f32.mrb[0].mxu0
  %963 = vmatprep.mubr.f32.mxu0 0.0
  %964 = vmatmul.mubr.f32.gmra.mrb[0].mxu0 %v824
  %v965 = vpop.f32.mrb[0].mxu0
  %v966 = vadd.f32 0.0, %v965
  %v967 = vpop.f32.mrb[0].mxu0
  %968 = vmatprep.mubr.f32.mxu0 0.0
  %969 = vmatmul.mubr.f32.gmra.mrb[0].mxu0 %v827
  %v970 = vpop.f32.mrb[0].mxu0
  %v971 = vadd.f32 0.0, %v970
  %v972 = vpop.f32.mrb[0].mxu0
  %973 = vdwg.mxu0
  %990 = vrot.lane.b32.xlu0 %v896, 68
  %v991 = vpop.permute.xlu0 %990
  %992 = vrot.lane.b32.xlu0 %v901, 68
  %v993 = vpop.permute.xlu0 %992
  %994 = vrot.lane.b32.xlu0 %v906, 68
  %v995 = vpop.permute.xlu0 %994
  %996 = vrot.lane.b32.xlu0 %v911, 68
  %v997 = vpop.permute.xlu0 %996
  %998 = vrot.lane.b32.xlu0 %v916, 68
  %v999 = vpop.permute.xlu0 %998
  %1000 = vrot.lane.b32.xlu0 %v921, 68
  %v1001 = vpop.permute.xlu0 %1000
  %1002 = vrot.lane.b32.xlu0 %v926, 68
  %v1003 = vpop.permute.xlu0 %1002
  %1004 = vrot.lane.b32.xlu0 %v931, 68
  %v1005 = vpop.permute.xlu0 %1004
  %1006 = vrot.lane.b32.xlu0 %v936, 68
  %v1007 = vpop.permute.xlu0 %1006
  %1008 = vrot.lane.b32.xlu0 %v941, 68
  %v1009 = vpop.permute.xlu0 %1008
  %1010 = vrot.lane.b32.xlu0 %v946, 68
  %v1011 = vpop.permute.xlu0 %1010
  %1012 = vrot.lane.b32.xlu0 %v951, 68
  %v1013 = vpop.permute.xlu0 %1012
  %1014 = vrot.lane.b32.xlu0 %v956, 68
  %v1015 = vpop.permute.xlu0 %1014
  %1016 = vrot.lane.b32.xlu0 %v961, 68
  %v1017 = vpop.permute.xlu0 %1016
  %1018 = vrot.lane.b32.xlu0 %v966, 68
  %v1019 = vpop.permute.xlu0 %1018
  %1020 = vrot.lane.b32.xlu0 %v971, 68
  %v1021 = vpop.permute.xlu0 %1020
  %v1038 = vmax.f32 %v896, %v991
  %v1039 = vmax.f32 %v901, %v993
  %v1040 = vmax.f32 %v906, %v995
  %v1041 = vmax.f32 %v911, %v997
  %v1042 = vmax.f32 %v916, %v999
  %v1043 = vmax.f32 %v921, %v1001
  %v1044 = vmax.f32 %v926, %v1003
  %v1045 = vmax.f32 %v931, %v1005
  %v1046 = vmax.f32 %v936, %v1007
  %v1047 = vmax.f32 %v941, %v1009
  %v1048 = vmax.f32 %v946, %v1011
  %v1049 = vmax.f32 %v951, %v1013
  %v1050 = vmax.f32 %v956, %v1015
  %v1051 = vmax.f32 %v961, %v1017
  %v1052 = vmax.f32 %v966, %v1019
  %v1053 = vmax.f32 %v971, %v1021
  %v1054 = vlaneseq
  %v1055 = vshrl.u32 %v1054, 7
  %v1056 = vadd.s32 %v1055, 8
  %v1057 = vadd.s32 %v1055, 16
  %v1058 = vadd.s32 %v1055, 24
  %v1059 = vadd.s32 %v1055, 32
  %v1060 = vadd.s32 %v1055, 40
  %v1061 = vadd.s32 %v1055, 48
  %v1062 = vadd.s32 %v1055, 56
  %v1063 = vadd.s32 %v1055, 64
  %v1064 = vadd.s32 %v1055, 72
  %v1065 = vadd.s32 %v1055, 80
  %v1066 = vadd.s32 %v1055, 88
  %v1067 = vadd.s32 %v1055, 96
  %v1068 = vadd.s32 %v1055, 104
  %v1069 = vadd.s32 %v1055, 112
  %v1070 = vadd.s32 %v1055, 120
  %v1071 = vand.u32 %v1055, 15
  %v1072 = vand.u32 %v1056, 15
  %v1073 = vand.u32 %v1057, 15
  %v1074 = vand.u32 %v1058, 15
  %v1075 = vand.u32 %v1059, 15
  %v1076 = vand.u32 %v1060, 15
  %v1077 = vand.u32 %v1061, 15
  %v1078 = vand.u32 %v1062, 15
  %v1079 = vand.u32 %v1063, 15
  %v1080 = vand.u32 %v1064, 15
  %v1081 = vand.u32 %v1065, 15
  %v1082 = vand.u32 %v1066, 15
  %v1083 = vand.u32 %v1067, 15
  %v1084 = vand.u32 %v1068, 15
  %v1085 = vand.u32 %v1069, 15
  %v1086 = vand.u32 %v1070, 15
  %vm1087 = vcmp.ge.s32.totalorder %v1071, 1
  %vm1088 = vcmp.ge.s32.totalorder %v1072, 1
  %vm1089 = vcmp.ge.s32.totalorder %v1073, 1
  %vm1090 = vcmp.ge.s32.totalorder %v1074, 1
  %vm1091 = vcmp.ge.s32.totalorder %v1075, 1
  %vm1092 = vcmp.ge.s32.totalorder %v1076, 1
  %vm1093 = vcmp.ge.s32.totalorder %v1077, 1
  %vm1094 = vcmp.ge.s32.totalorder %v1078, 1
  %vm1095 = vcmp.ge.s32.totalorder %v1079, 1
  %vm1096 = vcmp.ge.s32.totalorder %v1080, 1
  %vm1097 = vcmp.ge.s32.totalorder %v1081, 1
  %vm1098 = vcmp.ge.s32.totalorder %v1082, 1
  %vm1099 = vcmp.ge.s32.totalorder %v1083, 1
  %vm1100 = vcmp.ge.s32.totalorder %v1084, 1
  %vm1101 = vcmp.ge.s32.totalorder %v1085, 1
  %vm1102 = vcmp.ge.s32.totalorder %v1086, 1
  %vm1103 = vcmp.le.s32.totalorder %v1071, 13
  %vm1104 = vcmp.le.s32.totalorder %v1072, 13
  %vm1105 = vcmp.le.s32.totalorder %v1073, 13
  %vm1106 = vcmp.le.s32.totalorder %v1074, 13
  %vm1107 = vcmp.le.s32.totalorder %v1075, 13
  %vm1108 = vcmp.le.s32.totalorder %v1076, 13
  %vm1109 = vcmp.le.s32.totalorder %v1077, 13
  %vm1110 = vcmp.le.s32.totalorder %v1078, 13
  %vm1111 = vcmp.le.s32.totalorder %v1079, 13
  %vm1112 = vcmp.le.s32.totalorder %v1080, 13
  %vm1113 = vcmp.le.s32.totalorder %v1081, 13
  %vm1114 = vcmp.le.s32.totalorder %v1082, 13
  %vm1115 = vcmp.le.s32.totalorder %v1083, 13
  %vm1116 = vcmp.le.s32.totalorder %v1084, 13
  %vm1117 = vcmp.le.s32.totalorder %v1085, 13
  %vm1118 = vcmp.le.s32.totalorder %v1086, 13
  %vm1119 = vmand %vm1087, %vm1103
  %vm1120 = vmand %vm1088, %vm1104
  %vm1121 = vmand %vm1089, %vm1105
  %vm1122 = vmand %vm1090, %vm1106
  %vm1123 = vmand %vm1091, %vm1107
  %vm1124 = vmand %vm1092, %vm1108
  %vm1125 = vmand %vm1093, %vm1109
  %vm1126 = vmand %vm1094, %vm1110
  %vm1127 = vmand %vm1095, %vm1111
  %vm1128 = vmand %vm1096, %vm1112
  %vm1129 = vmand %vm1097, %vm1113
  %vm1130 = vmand %vm1098, %vm1114
  %vm1131 = vmand %vm1099, %vm1115
  %vm1132 = vmand %vm1100, %vm1116
  %vm1133 = vmand %vm1101, %vm1117
  %vm1134 = vmand %vm1102, %vm1118
  %v1135 = vsel %vm1119, 1, 0
  %v1136 = vsel %vm1120, 1, 0
  %v1137 = vsel %vm1121, 1, 0
  %v1138 = vsel %vm1122, 1, 0
  %v1139 = vsel %vm1123, 1, 0
  %v1140 = vsel %vm1124, 1, 0
  %v1141 = vsel %vm1125, 1, 0
  %v1142 = vsel %vm1126, 1, 0
  %v1143 = vsel %vm1127, 1, 0
  %v1144 = vsel %vm1128, 1, 0
  %v1145 = vsel %vm1129, 1, 0
  %v1146 = vsel %vm1130, 1, 0
  %v1147 = vsel %vm1131, 1, 0
  %v1148 = vsel %vm1132, 1, 0
  %v1149 = vsel %vm1133, 1, 0
  %v1150 = vsel %vm1134, 1, 0
  %vm1151 = vcmp.eq.s32.totalorder %v1135, 1
  %vm1152 = vcmp.eq.s32.totalorder %v1136, 1
  %vm1153 = vcmp.eq.s32.totalorder %v1137, 1
  %vm1154 = vcmp.eq.s32.totalorder %v1138, 1
  %vm1155 = vcmp.eq.s32.totalorder %v1139, 1
  %vm1156 = vcmp.eq.s32.totalorder %v1140, 1
  %vm1157 = vcmp.eq.s32.totalorder %v1141, 1
  %vm1158 = vcmp.eq.s32.totalorder %v1142, 1
  %vm1159 = vcmp.eq.s32.totalorder %v1143, 1
  %vm1160 = vcmp.eq.s32.totalorder %v1144, 1
  %vm1161 = vcmp.eq.s32.totalorder %v1145, 1
  %vm1162 = vcmp.eq.s32.totalorder %v1146, 1
  %vm1163 = vcmp.eq.s32.totalorder %v1147, 1
  %vm1164 = vcmp.eq.s32.totalorder %v1148, 1
  %vm1165 = vcmp.eq.s32.totalorder %v1149, 1
  %vm1166 = vcmp.eq.s32.totalorder %v1150, 1
  %v1167 = vsel %vm1151, %v1038, 0.0
  %v1168 = vsel %vm1152, %v1039, 0.0
  %v1169 = vsel %vm1153, %v1040, 0.0
  %v1170 = vsel %vm1154, %v1041, 0.0
  %v1171 = vsel %vm1155, %v1042, 0.0
  %v1172 = vsel %vm1156, %v1043, 0.0
  %v1173 = vsel %vm1157, %v1044, 0.0
  %v1174 = vsel %vm1158, %v1045, 0.0
  %v1175 = vsel %vm1159, %v1046, 0.0
  %v1176 = vsel %vm1160, %v1047, 0.0
  %v1177 = vsel %vm1161, %v1048, 0.0
  %v1178 = vsel %vm1162, %v1049, 0.0
  %v1179 = vsel %vm1163, %v1050, 0.0
  %v1180 = vsel %vm1164, %v1051, 0.0
  %v1181 = vsel %vm1165, %v1052, 0.0
  %v1182 = vsel %vm1166, %v1053, 0.0
  %v1199 = vrot.slane %v1167, 1
  %v1200 = vrot.slane %v1168, 1
  %v1201 = vsel %vm113, %v1199, %v1200
  %v1202 = vrot.slane %v1169, 1
  %v1203 = vsel %vm113, %v1200, %v1202
  %v1204 = vrot.slane %v1170, 1
  %v1205 = vsel %vm113, %v1202, %v1204
  %v1206 = vrot.slane %v1171, 1
  %v1207 = vsel %vm113, %v1204, %v1206
  %v1208 = vrot.slane %v1172, 1
  %v1209 = vsel %vm113, %v1206, %v1208
  %v1210 = vrot.slane %v1173, 1
  %v1211 = vsel %vm113, %v1208, %v1210
  %v1212 = vrot.slane %v1174, 1
  %v1213 = vsel %vm113, %v1210, %v1212
  %v1214 = vrot.slane %v1175, 1
  %v1215 = vsel %vm113, %v1212, %v1214
  %v1216 = vrot.slane %v1176, 1
  %v1217 = vsel %vm113, %v1214, %v1216
  %v1218 = vrot.slane %v1177, 1
  %v1219 = vsel %vm113, %v1216, %v1218
  %v1220 = vrot.slane %v1178, 1
  %v1221 = vsel %vm113, %v1218, %v1220
  %v1222 = vrot.slane %v1179, 1
  %v1223 = vsel %vm113, %v1220, %v1222
  %v1224 = vrot.slane %v1180, 1
  %v1225 = vsel %vm113, %v1222, %v1224
  %v1226 = vrot.slane %v1181, 1
  %v1227 = vsel %vm113, %v1224, %v1226
  %v1228 = vrot.slane %v1182, 1
  %v1229 = vsel %vm113, %v1226, %v1228
  %v1231 = vsel %vm113, %v1228, 0.0
  %vm1232 = vcmask 1045504
  %v1233 = vrot.slane %v1167, 2
  %v1234 = vrot.slane %v1168, 2
  %v1235 = vsel %vm1232, %v1233, %v1234
  %v1236 = vrot.slane %v1169, 2
  %v1237 = vsel %vm1232, %v1234, %v1236
  %v1238 = vrot.slane %v1170, 2
  %v1239 = vsel %vm1232, %v1236, %v1238
  %v1240 = vrot.slane %v1171, 2
  %v1241 = vsel %vm1232, %v1238, %v1240
  %v1242 = vrot.slane %v1172, 2
  %v1243 = vsel %vm1232, %v1240, %v1242
  %v1244 = vrot.slane %v1173, 2
  %v1245 = vsel %vm1232, %v1242, %v1244
  %v1246 = vrot.slane %v1174, 2
  %v1247 = vsel %vm1232, %v1244, %v1246
  %v1248 = vrot.slane %v1175, 2
  %v1249 = vsel %vm1232, %v1246, %v1248
  %v1250 = vrot.slane %v1176, 2
  %v1251 = vsel %vm1232, %v1248, %v1250
  %v1252 = vrot.slane %v1177, 2
  %v1253 = vsel %vm1232, %v1250, %v1252
  %v1254 = vrot.slane %v1178, 2
  %v1255 = vsel %vm1232, %v1252, %v1254
  %v1256 = vrot.slane %v1179, 2
  %v1257 = vsel %vm1232, %v1254, %v1256
  %v1258 = vrot.slane %v1180, 2
  %v1259 = vsel %vm1232, %v1256, %v1258
  %v1260 = vrot.slane %v1181, 2
  %v1261 = vsel %vm1232, %v1258, %v1260
  %v1262 = vrot.slane %v1182, 2
  %v1263 = vsel %vm1232, %v1260, %v1262
  %v1265 = vsel %vm1232, %v1262, 0.0
  %vm1266 = vcmask 1044480
  %v1267 = vrot.slane %v1167, 3
  %v1268 = vrot.slane %v1168, 3
  %v1269 = vsel %vm1266, %v1267, %v1268
  %v1270 = vrot.slane %v1169, 3
  %v1271 = vsel %vm1266, %v1268, %v1270
  %v1272 = vrot.slane %v1170, 3
  %v1273 = vsel %vm1266, %v1270, %v1272
  %v1274 = vrot.slane %v1171, 3
  %v1275 = vsel %vm1266, %v1272, %v1274
  %v1276 = vrot.slane %v1172, 3
  %v1277 = vsel %vm1266, %v1274, %v1276
  %v1278 = vrot.slane %v1173, 3
  %v1279 = vsel %vm1266, %v1276, %v1278
  %v1280 = vrot.slane %v1174, 3
  %v1281 = vsel %vm1266, %v1278, %v1280
  %v1282 = vrot.slane %v1175, 3
  %v1283 = vsel %vm1266, %v1280, %v1282
  %v1284 = vrot.slane %v1176, 3
  %v1285 = vsel %vm1266, %v1282, %v1284
  %v1286 = vrot.slane %v1177, 3
  %v1287 = vsel %vm1266, %v1284, %v1286
  %v1288 = vrot.slane %v1178, 3
  %v1289 = vsel %vm1266, %v1286, %v1288
  %v1290 = vrot.slane %v1179, 3
  %v1291 = vsel %vm1266, %v1288, %v1290
  %v1292 = vrot.slane %v1180, 3
  %v1293 = vsel %vm1266, %v1290, %v1292
  %v1294 = vrot.slane %v1181, 3
  %v1295 = vsel %vm1266, %v1292, %v1294
  %v1296 = vrot.slane %v1182, 3
  %v1297 = vsel %vm1266, %v1294, %v1296
  %v1299 = vsel %vm1266, %v1296, 0.0
  %vm1300 = vcmask 1043456
  %v1301 = vrot.slane %v1167, 4
  %v1302 = vrot.slane %v1168, 4
  %v1303 = vsel %vm1300, %v1301, %v1302
  %v1304 = vrot.slane %v1169, 4
  %v1305 = vsel %vm1300, %v1302, %v1304
  %v1306 = vrot.slane %v1170, 4
  %v1307 = vsel %vm1300, %v1304, %v1306
  %v1308 = vrot.slane %v1171, 4
  %v1309 = vsel %vm1300, %v1306, %v1308
  %v1310 = vrot.slane %v1172, 4
  %v1311 = vsel %vm1300, %v1308, %v1310
  %v1312 = vrot.slane %v1173, 4
  %v1313 = vsel %vm1300, %v1310, %v1312
  %v1314 = vrot.slane %v1174, 4
  %v1315 = vsel %vm1300, %v1312, %v1314
  %v1316 = vrot.slane %v1175, 4
  %v1317 = vsel %vm1300, %v1314, %v1316
  %v1318 = vrot.slane %v1176, 4
  %v1319 = vsel %vm1300, %v1316, %v1318
  %v1320 = vrot.slane %v1177, 4
  %v1321 = vsel %vm1300, %v1318, %v1320
  %v1322 = vrot.slane %v1178, 4
  %v1323 = vsel %vm1300, %v1320, %v1322
  %v1324 = vrot.slane %v1179, 4
  %v1325 = vsel %vm1300, %v1322, %v1324
  %v1326 = vrot.slane %v1180, 4
  %v1327 = vsel %vm1300, %v1324, %v1326
  %v1328 = vrot.slane %v1181, 4
  %v1329 = vsel %vm1300, %v1326, %v1328
  %v1330 = vrot.slane %v1182, 4
  %v1331 = vsel %vm1300, %v1328, %v1330
  %v1333 = vsel %vm1300, %v1330, 0.0
  %1335 = vrot.lane.b32.xlu0 %v1201, 60
  %v1336 = vpop.permute.xlu0 %1335
  %1337 = vrot.lane.b32.xlu0 %v1203, 60
  %v1338 = vpop.permute.xlu0 %1337
  %1339 = vrot.lane.b32.xlu0 %v1205, 60
  %v1340 = vpop.permute.xlu0 %1339
  %1341 = vrot.lane.b32.xlu0 %v1207, 60
  %v1342 = vpop.permute.xlu0 %1341
  %1343 = vrot.lane.b32.xlu0 %v1209, 60
  %v1344 = vpop.permute.xlu0 %1343
  %1345 = vrot.lane.b32.xlu0 %v1211, 60
  %v1346 = vpop.permute.xlu0 %1345
  %1347 = vrot.lane.b32.xlu0 %v1213, 60
  %v1348 = vpop.permute.xlu0 %1347
  %1349 = vrot.lane.b32.xlu0 %v1215, 60
  %v1350 = vpop.permute.xlu0 %1349
  %1351 = vrot.lane.b32.xlu0 %v1217, 60
  %v1352 = vpop.permute.xlu0 %1351
  %1353 = vrot.lane.b32.xlu0 %v1219, 60
  %v1354 = vpop.permute.xlu0 %1353
  %1355 = vrot.lane.b32.xlu0 %v1221, 60
  %v1356 = vpop.permute.xlu0 %1355
  %1357 = vrot.lane.b32.xlu0 %v1223, 60
  %v1358 = vpop.permute.xlu0 %1357
  %1359 = vrot.lane.b32.xlu0 %v1225, 60
  %v1360 = vpop.permute.xlu0 %1359
  %1361 = vrot.lane.b32.xlu0 %v1227, 60
  %v1362 = vpop.permute.xlu0 %1361
  %1363 = vrot.lane.b32.xlu0 %v1229, 60
  %v1364 = vpop.permute.xlu0 %1363
  %1365 = vrot.lane.b32.xlu0 %v1231, 60
  %v1366 = vpop.permute.xlu0 %1365
  %1384 = vrot.lane.b32.xlu0 %v1235, 120
  %v1385 = vpop.permute.xlu0 %1384
  %1386 = vrot.lane.b32.xlu0 %v1237, 120
  %v1387 = vpop.permute.xlu0 %1386
  %1388 = vrot.lane.b32.xlu0 %v1239, 120
  %v1389 = vpop.permute.xlu0 %1388
  %1390 = vrot.lane.b32.xlu0 %v1241, 120
  %v1391 = vpop.permute.xlu0 %1390
  %1392 = vrot.lane.b32.xlu0 %v1243, 120
  %v1393 = vpop.permute.xlu0 %1392
  %1394 = vrot.lane.b32.xlu0 %v1245, 120
  %v1395 = vpop.permute.xlu0 %1394
  %1396 = vrot.lane.b32.xlu0 %v1247, 120
  %v1397 = vpop.permute.xlu0 %1396
  %1398 = vrot.lane.b32.xlu0 %v1249, 120
  %v1399 = vpop.permute.xlu0 %1398
  %1400 = vrot.lane.b32.xlu0 %v1251, 120
  %v1401 = vpop.permute.xlu0 %1400
  %1402 = vrot.lane.b32.xlu0 %v1253, 120
  %v1403 = vpop.permute.xlu0 %1402
  %1404 = vrot.lane.b32.xlu0 %v1255, 120
  %v1405 = vpop.permute.xlu0 %1404
  %1406 = vrot.lane.b32.xlu0 %v1257, 120
  %v1407 = vpop.permute.xlu0 %1406
  %1408 = vrot.lane.b32.xlu0 %v1259, 120
  %v1409 = vpop.permute.xlu0 %1408
  %1410 = vrot.lane.b32.xlu0 %v1261, 120
  %v1411 = vpop.permute.xlu0 %1410
  %1412 = vrot.lane.b32.xlu0 %v1263, 120
  %v1413 = vpop.permute.xlu0 %1412
  %1414 = vrot.lane.b32.xlu0 %v1265, 120
  %v1415 = vpop.permute.xlu0 %1414
  %1433 = vrot.lane.b32.xlu0 %v1269, 52
  %v1434 = vpop.permute.xlu0 %1433
  %1435 = vrot.lane.b32.xlu0 %v1271, 52
  %v1436 = vpop.permute.xlu0 %1435
  %1437 = vrot.lane.b32.xlu0 %v1273, 52
  %v1438 = vpop.permute.xlu0 %1437
  %1439 = vrot.lane.b32.xlu0 %v1275, 52
  %v1440 = vpop.permute.xlu0 %1439
  %1441 = vrot.lane.b32.xlu0 %v1277, 52
  %v1442 = vpop.permute.xlu0 %1441
  %1443 = vrot.lane.b32.xlu0 %v1279, 52
  %v1444 = vpop.permute.xlu0 %1443
  %1445 = vrot.lane.b32.xlu0 %v1281, 52
  %v1446 = vpop.permute.xlu0 %1445
  %1447 = vrot.lane.b32.xlu0 %v1283, 52
  %v1448 = vpop.permute.xlu0 %1447
  %1449 = vrot.lane.b32.xlu0 %v1285, 52
  %v1450 = vpop.permute.xlu0 %1449
  %1451 = vrot.lane.b32.xlu0 %v1287, 52
  %v1452 = vpop.permute.xlu0 %1451
  %1453 = vrot.lane.b32.xlu0 %v1289, 52
  %v1454 = vpop.permute.xlu0 %1453
  %1455 = vrot.lane.b32.xlu0 %v1291, 52
  %v1456 = vpop.permute.xlu0 %1455
  %1457 = vrot.lane.b32.xlu0 %v1293, 52
  %v1458 = vpop.permute.xlu0 %1457
  %1459 = vrot.lane.b32.xlu0 %v1295, 52
  %v1460 = vpop.permute.xlu0 %1459
  %1461 = vrot.lane.b32.xlu0 %v1297, 52
  %v1462 = vpop.permute.xlu0 %1461
  %1463 = vrot.lane.b32.xlu0 %v1299, 52
  %v1464 = vpop.permute.xlu0 %1463
  %1482 = vrot.lane.b32.xlu0 %v1303, 112
  %v1483 = vpop.permute.xlu0 %1482
  %1484 = vrot.lane.b32.xlu0 %v1305, 112
  %v1485 = vpop.permute.xlu0 %1484
  %1486 = vrot.lane.b32.xlu0 %v1307, 112
  %v1487 = vpop.permute.xlu0 %1486
  %1488 = vrot.lane.b32.xlu0 %v1309, 112
  %v1489 = vpop.permute.xlu0 %1488
  %1490 = vrot.lane.b32.xlu0 %v1311, 112
  %v1491 = vpop.permute.xlu0 %1490
  %1492 = vrot.lane.b32.xlu0 %v1313, 112
  %v1493 = vpop.permute.xlu0 %1492
  %1494 = vrot.lane.b32.xlu0 %v1315, 112
  %v1495 = vpop.permute.xlu0 %1494
  %1496 = vrot.lane.b32.xlu0 %v1317, 112
  %v1497 = vpop.permute.xlu0 %1496
  %1498 = vrot.lane.b32.xlu0 %v1319, 112
  %v1499 = vpop.permute.xlu0 %1498
  %1500 = vrot.lane.b32.xlu0 %v1321, 112
  %v1501 = vpop.permute.xlu0 %1500
  %1502 = vrot.lane.b32.xlu0 %v1323, 112
  %v1503 = vpop.permute.xlu0 %1502
  %1504 = vrot.lane.b32.xlu0 %v1325, 112
  %v1505 = vpop.permute.xlu0 %1504
  %1506 = vrot.lane.b32.xlu0 %v1327, 112
  %v1507 = vpop.permute.xlu0 %1506
  %1508 = vrot.lane.b32.xlu0 %v1329, 112
  %v1509 = vpop.permute.xlu0 %1508
  %1510 = vrot.lane.b32.xlu0 %v1331, 112
  %v1511 = vpop.permute.xlu0 %1510
  %1512 = vrot.lane.b32.xlu0 %v1333, 112
  %v1513 = vpop.permute.xlu0 %1512
  %vm1530 = vcmask 490496
  %v1531 = vsel %vm1530, %v1167, %v1336
  %v1532 = vsel %vm1530, %v1168, %v1338
  %v1533 = vsel %vm1530, %v1169, %v1340
  %v1534 = vsel %vm1530, %v1170, %v1342
  %v1535 = vsel %vm1530, %v1171, %v1344
  %v1536 = vsel %vm1530, %v1172, %v1346
  %v1537 = vsel %vm1530, %v1173, %v1348
  %v1538 = vsel %vm1530, %v1174, %v1350
  %v1539 = vsel %vm1530, %v1175, %v1352
  %v1540 = vsel %vm1530, %v1176, %v1354
  %v1541 = vsel %vm1530, %v1177, %v1356
  %v1542 = vsel %vm1530, %v1178, %v1358
  %v1543 = vsel %vm1530, %v1179, %v1360
  %v1544 = vsel %vm1530, %v1180, %v1362
  %v1545 = vsel %vm1530, %v1181, %v1364
  %v1546 = vsel %vm1530, %v1182, %v1366
  %vm1547 = vcmask 982016
  %v1548 = vsel %vm1547, %v1531, %v1385
  %v1549 = vsel %vm1547, %v1532, %v1387
  %v1550 = vsel %vm1547, %v1533, %v1389
  %v1551 = vsel %vm1547, %v1534, %v1391
  %v1552 = vsel %vm1547, %v1535, %v1393
  %v1553 = vsel %vm1547, %v1536, %v1395
  %v1554 = vsel %vm1547, %v1537, %v1397
  %v1555 = vsel %vm1547, %v1538, %v1399
  %v1556 = vsel %vm1547, %v1539, %v1401
  %v1557 = vsel %vm1547, %v1540, %v1403
  %v1558 = vsel %vm1547, %v1541, %v1405
  %v1559 = vsel %vm1547, %v1542, %v1407
  %v1560 = vsel %vm1547, %v1543, %v1409
  %v1561 = vsel %vm1547, %v1544, %v1411
  %v1562 = vsel %vm1547, %v1545, %v1413
  %v1563 = vsel %vm1547, %v1546, %v1415
  %vm1564 = vcmask 424960
  %v1565 = vsel %vm1564, %v1385, %v1434
  %v1566 = vsel %vm1564, %v1387, %v1436
  %v1567 = vsel %vm1564, %v1389, %v1438
  %v1568 = vsel %vm1564, %v1391, %v1440
  %v1569 = vsel %vm1564, %v1393, %v1442
  %v1570 = vsel %vm1564, %v1395, %v1444
  %v1571 = vsel %vm1564, %v1397, %v1446
  %v1572 = vsel %vm1564, %v1399, %v1448
  %v1573 = vsel %vm1564, %v1401, %v1450
  %v1574 = vsel %vm1564, %v1403, %v1452
  %v1575 = vsel %vm1564, %v1405, %v1454
  %v1576 = vsel %vm1564, %v1407, %v1456
  %v1577 = vsel %vm1564, %v1409, %v1458
  %v1578 = vsel %vm1564, %v1411, %v1460
  %v1579 = vsel %vm1564, %v1413, %v1462
  %v1580 = vsel %vm1564, %v1415, %v1464
  %v1581 = vsel %vm261, %v1565, %v1483
  %v1582 = vsel %vm261, %v1566, %v1485
  %v1583 = vsel %vm261, %v1567, %v1487
  %v1584 = vsel %vm261, %v1568, %v1489
  %v1585 = vsel %vm261, %v1569, %v1491
  %v1586 = vsel %vm261, %v1570, %v1493
  %v1587 = vsel %vm261, %v1571, %v1495
  %v1588 = vsel %vm261, %v1572, %v1497
  %v1589 = vsel %vm261, %v1573, %v1499
  %v1590 = vsel %vm261, %v1574, %v1501
  %v1591 = vsel %vm261, %v1575, %v1503
  %v1592 = vsel %vm261, %v1576, %v1505
  %v1593 = vsel %vm261, %v1577, %v1507
  %v1594 = vsel %vm261, %v1578, %v1509
  %v1595 = vsel %vm261, %v1579, %v1511
  %v1596 = vsel %vm261, %v1580, %v1513
  %v1597 = vld [vmem:[%s4] sm:$0xff]
  %v1598 = vld [vmem:[%s4 + $0x8] sm:$0xff]
  %v1599 = vld [vmem:[%s4 + $0x10] sm:$0xff]
  %v1600 = vld [vmem:[%s4 + $0x18] sm:$0xff]
  %v1601 = vld [vmem:[%s4 + $0x20] sm:$0xff]
  %v1602 = vld [vmem:[%s4 + $0x28] sm:$0xff]
  %v1603 = vld [vmem:[%s4 + $0x30] sm:$0xff]
  %v1604 = vld [vmem:[%s4 + $0x38] sm:$0xff]
  %v1605 = vld [vmem:[%s4 + $0x40] sm:$0xff]
  %v1606 = vld [vmem:[%s4 + $0x48] sm:$0xff]
  %v1607 = vld [vmem:[%s4 + $0x50] sm:$0xff]
  %v1608 = vld [vmem:[%s4 + $0x58] sm:$0xff]
  %v1609 = vld [vmem:[%s4 + $0x60] sm:$0xff]
  %v1610 = vld [vmem:[%s4 + $0x68] sm:$0xff]
  %v1611 = vld [vmem:[%s4 + $0x70] sm:$0xff]
  %v1612 = vld [vmem:[%s4 + $0x78] sm:$0xff]
  %v1613 = vld [vmem:[%s4 + $0x80] sm:$0xff]
  %v1614 = vld [vmem:[%s4 + $0x88] sm:$0xff]
  %v1615 = vld [vmem:[%s4 + $0x90] sm:$0xff]
  %v1616 = vld [vmem:[%s4 + $0x98] sm:$0xff]
  %v1617 = vld [vmem:[%s4 + $0xa0] sm:$0xff]
  %v1618 = vld [vmem:[%s4 + $0xa8] sm:$0xff]
  %v1619 = vld [vmem:[%s4 + $0xb0] sm:$0xff]
  %v1620 = vld [vmem:[%s4 + $0xb8] sm:$0xff]
  %v1621 = vld [vmem:[%s4 + $0xc0] sm:$0xff]
  %v1622 = vld [vmem:[%s4 + $0xc8] sm:$0xff]
  %v1623 = vld [vmem:[%s4 + $0xd0] sm:$0xff]
  %v1624 = vld [vmem:[%s4 + $0xd8] sm:$0xff]
  %v1625 = vld [vmem:[%s4 + $0xe0] sm:$0xff]
  %v1626 = vld [vmem:[%s4 + $0xe8] sm:$0xff]
  %v1627 = vld [vmem:[%s4 + $0xf0] sm:$0xff]
  %v1628 = vld [vmem:[%s4 + $0xf8] sm:$0xff]
  %v1629 = vld [vmem:[%s4 + $0x100] sm:$0xff]
  %v1630 = vld [vmem:[%s4 + $0x108] sm:$0xff]
  %v1631 = vld [vmem:[%s4 + $0x110] sm:$0xff]
  %v1632 = vld [vmem:[%s4 + $0x118] sm:$0xff]
  %v1633 = vld [vmem:[%s4 + $0x120] sm:$0xff]
  %v1634 = vld [vmem:[%s4 + $0x128] sm:$0xff]
  %v1635 = vld [vmem:[%s4 + $0x130] sm:$0xff]
  %v1636 = vld [vmem:[%s4 + $0x138] sm:$0xff]
  %v1637 = vld [vmem:[%s4 + $0x140] sm:$0xff]
  %v1638 = vld [vmem:[%s4 + $0x148] sm:$0xff]
  %v1639 = vld [vmem:[%s4 + $0x150] sm:$0xff]
  %v1640 = vld [vmem:[%s4 + $0x158] sm:$0xff]
  %v1641 = vld [vmem:[%s4 + $0x160] sm:$0xff]
  %v1642 = vld [vmem:[%s4 + $0x168] sm:$0xff]
  %v1643 = vld [vmem:[%s4 + $0x170] sm:$0xff]
  %v1644 = vld [vmem:[%s4 + $0x178] sm:$0xff]
  %v1645 = vld [vmem:[%s4 + $0x180] sm:$0xff]
  %v1646 = vld [vmem:[%s4 + $0x188] sm:$0xff]
  %v1647 = vld [vmem:[%s4 + $0x190] sm:$0xff]
  %v1648 = vld [vmem:[%s4 + $0x198] sm:$0xff]
  %v1649 = vld [vmem:[%s4 + $0x1a0] sm:$0xff]
  %v1650 = vld [vmem:[%s4 + $0x1a8] sm:$0xff]
  %v1651 = vld [vmem:[%s4 + $0x1b0] sm:$0xff]
  %v1652 = vld [vmem:[%s4 + $0x1b8] sm:$0xff]
  %v1653 = vld [vmem:[%s4 + $0x1c0] sm:$0xff]
  %v1654 = vld [vmem:[%s4 + $0x1c8] sm:$0xff]
  %v1655 = vld [vmem:[%s4 + $0x1d0] sm:$0xff]
  %v1656 = vld [vmem:[%s4 + $0x1d8] sm:$0xff]
  %v1657 = vld [vmem:[%s4 + $0x1e0] sm:$0xff]
  %v1658 = vld [vmem:[%s4 + $0x1e8] sm:$0xff]
  %v1659 = vld [vmem:[%s4 + $0x1f0] sm:$0xff]
  %v1660 = vld [vmem:[%s4 + $0x1f8] sm:$0xff]
  %v1661 = vld [vmem:[%s4 + $0x200] sm:$0xff]
  %v1662 = vld [vmem:[%s4 + $0x208] sm:$0xff]
  %v1663 = vld [vmem:[%s4 + $0x210] sm:$0xff]
  %v1664 = vld [vmem:[%s4 + $0x218] sm:$0xff]
  %v1665 = vld [vmem:[%s4 + $0x220] sm:$0xff]
  %v1666 = vld [vmem:[%s4 + $0x228] sm:$0xff]
  %v1667 = vld [vmem:[%s4 + $0x230] sm:$0xff]
  %v1668 = vld [vmem:[%s4 + $0x238] sm:$0xff]
  %v1669 = vld [vmem:[%s4 + $0x240] sm:$0xff]
  %v1670 = vld [vmem:[%s4 + $0x248] sm:$0xff]
  %v1671 = vld [vmem:[%s4 + $0x250] sm:$0xf]
  %v1672 = vld [vmem:[%s4 + $0x258] sm:$0xf]
  %v1673 = vld [vmem:[%s5] sm:$0x3]
  %v1675 = vlaneseq
  %v1676 = vshrl.u32 %v1675, 7
  %v1677 = vsub.s32 0, %v1676
  %v1678 = vrot.slane %v1673, %v1677
  %v1679 = vlaneseq
  %v1680 = vshrl.u32 %v1679, 7
  %v1681 = vsub.s32 1, %v1680
  %v1682 = vrot.slane %v1673, %v1681
  %vm1685 = vcmask 359424
  %v1686 = vsel %vm1685, %v1483, 0
  %v1688 = vsel %vm1685, %v1485, 0
  %v1690 = vsel %vm1685, %v1487, 0
  %v1692 = vsel %vm1685, %v1489, 0
  %v1694 = vsel %vm1685, %v1491, 0
  %v1696 = vsel %vm1685, %v1493, 0
  %v1698 = vsel %vm1685, %v1495, 0
  %v1700 = vsel %vm1685, %v1497, 0
  %v1702 = vsel %vm1685, %v1499, 0
  %v1704 = vsel %vm1685, %v1501, 0
  %v1706 = vsel %vm1685, %v1503, 0
  %v1708 = vsel %vm1685, %v1505, 0
  %v1710 = vsel %vm1685, %v1507, 0
  %v1712 = vsel %vm1685, %v1509, 0
  %v1714 = vsel %vm1685, %v1511, 0
  %v1716 = vsel %vm1685, %v1513, 0
  %v1719 = vsel %vm1300, %v1671, 0
  %v1722 = vsel %vm1300, %v1672, 0
  %1724 = vmatprep.subr.mxu0 %v1598
  %1725 = vmatpush1.msra.mxu0 %v1597
  %1726 = vmatprep.subr.mxu0 %v1600
  %1727 = vmatpush1.msra.mxu0 %v1599
  %1728 = vmatprep.subr.mxu0 %v1602
  %1729 = vmatpush1.msra.mxu0 %v1601
  %1730 = vmatprep.subr.mxu0 %v1604
  %1731 = vmatpush1.msra.mxu0 %v1603
  %1732 = vmatprep.subr.mxu0 %v1606
  %1733 = vmatpush1.msra.mxu0 %v1605
  %1734 = vmatprep.subr.mxu0 %v1608
  %1735 = vmatpush1.msra.mxu0 %v1607
  %1736 = vmatprep.subr.mxu0 %v1610
  %1737 = vmatpush1.msra.mxu0 %v1609
  %1738 = vmatprep.subr.mxu0 %v1612
  %1739 = vmatpush1.msra.mxu0 %v1611
  %1740 = vmatprep.subr.mxu0 %v1614
  %1741 = vmatpush1.msra.mxu0 %v1613
  %1742 = vmatprep.subr.mxu0 %v1616
  %1743 = vmatpush1.msra.mxu0 %v1615
  %1744 = vmatprep.subr.mxu0 %v1618
  %1745 = vmatpush1.msra.mxu0 %v1617
  %1746 = vmatprep.subr.mxu0 %v1620
  %1747 = vmatpush1.msra.mxu0 %v1619
  %1748 = vmatprep.subr.mxu0 %v1622
  %1749 = vmatpush1.msra.mxu0 %v1621
  %1750 = vmatprep.subr.mxu0 %v1624
  %1751 = vmatpush1.msra.mxu0 %v1623
  %1752 = vmatprep.subr.mxu0 %v1626
  %1753 = vmatpush1.msra.mxu0 %v1625
  %1754 = vmatprep.subr.mxu0 %v1628
  %1755 = vmatpush1.msra.mxu0 %v1627
  %1756 = vmatprep.subr.mxu0 %v1630
  %1757 = vmatpush1.msra.mxu0 %v1629
  %1758 = vmatprep.subr.mxu0 %v1632
  %1759 = vmatpush1.msra.mxu0 %v1631
  %1760 = vmatprep.subr.mxu0 %v1634
  %1761 = vmatpush1.msra.mxu0 %v1633
  %1762 = vmatprep.subr.mxu0 %v1636
  %1763 = vmatpush1.msra.mxu0 %v1635
  %1764 = vmatprep.subr.mxu0 %v1638
  %1765 = vmatpush1.msra.mxu0 %v1637
  %1766 = vmatprep.subr.mxu0 %v1640
  %1767 = vmatpush1.msra.mxu0 %v1639
  %1768 = vmatprep.subr.mxu0 %v1642
  %1769 = vmatpush1.msra.mxu0 %v1641
  %1770 = vmatprep.subr.mxu0 %v1644
  %1771 = vmatpush1.msra.mxu0 %v1643
  %1772 = vmatprep.subr.mxu0 %v1646
  %1773 = vmatpush1.msra.mxu0 %v1645
  %1774 = vmatprep.subr.mxu0 %v1648
  %1775 = vmatpush1.msra.mxu0 %v1647
  %1776 = vmatprep.subr.mxu0 %v1650
  %1777 = vmatpush1.msra.mxu0 %v1649
  %1778 = vmatprep.subr.mxu0 %v1652
  %1779 = vmatpush1.msra.mxu0 %v1651
  %1780 = vmatprep.subr.mxu0 %v1654
  %1781 = vmatpush1.msra.mxu0 %v1653
  %1782 = vmatprep.subr.mxu0 %v1656
  %1783 = vmatpush1.msra.mxu0 %v1655
  %1784 = vmatprep.subr.mxu0 %v1658
  %1785 = vmatpush1.msra.mxu0 %v1657
  %1786 = vmatprep.subr.mxu0 %v1660
  %1787 = vmatpush1.msra.mxu0 %v1659
  %1788 = vmatprep.mubr.f32.mxu0 %v1581
  %1789 = vmatmul.mubr.f32.gmra.mrb[0].mxu0 %v1548
  %v1790 = vpop.f32.mrb[0].mxu0
  %v1791 = vadd.f32 %v1678, %v1790
  %v1792 = vpop.f32.mrb[0].mxu0
  %v1793 = vadd.f32 %v1682, %v1792
  %1794 = vmatprep.mubr.f32.mxu0 %v1582
  %1795 = vmatmul.mubr.f32.gmra.mrb[0].mxu0 %v1549
  %v1796 = vpop.f32.mrb[0].mxu0
  %v1797 = vadd.f32 %v1678, %v1796
  %v1798 = vpop.f32.mrb[0].mxu0
  %v1799 = vadd.f32 %v1682, %v1798
  %1800 = vmatprep.mubr.f32.mxu0 %v1583
  %1801 = vmatmul.mubr.f32.gmra.mrb[0].mxu0 %v1550
  %v1802 = vpop.f32.mrb[0].mxu0
  %v1803 = vadd.f32 %v1678, %v1802
  %v1804 = vpop.f32.mrb[0].mxu0
  %v1805 = vadd.f32 %v1682, %v1804
  %1806 = vmatprep.mubr.f32.mxu0 %v1584
  %1807 = vmatmul.mubr.f32.gmra.mrb[0].mxu0 %v1551
  %v1808 = vpop.f32.mrb[0].mxu0
  %v1809 = vadd.f32 %v1678, %v1808
  %v1810 = vpop.f32.mrb[0].mxu0
  %v1811 = vadd.f32 %v1682, %v1810
  %1812 = vmatprep.mubr.f32.mxu0 %v1585
  %1813 = vmatmul.mubr.f32.gmra.mrb[0].mxu0 %v1552
  %v1814 = vpop.f32.mrb[0].mxu0
  %v1815 = vadd.f32 %v1678, %v1814
  %v1816 = vpop.f32.mrb[0].mxu0
  %v1817 = vadd.f32 %v1682, %v1816
  %1818 = vmatprep.mubr.f32.mxu0 %v1586
  %1819 = vmatmul.mubr.f32.gmra.mrb[0].mxu0 %v1553
  %v1820 = vpop.f32.mrb[0].mxu0
  %v1821 = vadd.f32 %v1678, %v1820
  %v1822 = vpop.f32.mrb[0].mxu0
  %v1823 = vadd.f32 %v1682, %v1822
  %1824 = vmatprep.mubr.f32.mxu0 %v1587
  %1825 = vmatmul.mubr.f32.gmra.mrb[0].mxu0 %v1554
  %v1826 = vpop.f32.mrb[0].mxu0
  %v1827 = vadd.f32 %v1678, %v1826
  %v1828 = vpop.f32.mrb[0].mxu0
  %v1829 = vadd.f32 %v1682, %v1828
  %1830 = vmatprep.mubr.f32.mxu0 %v1588
  %1831 = vmatmul.mubr.f32.gmra.mrb[0].mxu0 %v1555
  %v1832 = vpop.f32.mrb[0].mxu0
  %v1833 = vadd.f32 %v1678, %v1832
  %v1834 = vpop.f32.mrb[0].mxu0
  %v1835 = vadd.f32 %v1682, %v1834
  %1836 = vmatprep.mubr.f32.mxu0 %v1589
  %1837 = vmatmul.mubr.f32.gmra.mrb[0].mxu0 %v1556
  %v1838 = vpop.f32.mrb[0].mxu0
  %v1839 = vadd.f32 %v1678, %v1838
  %v1840 = vpop.f32.mrb[0].mxu0
  %v1841 = vadd.f32 %v1682, %v1840
  %1842 = vmatprep.mubr.f32.mxu0 %v1590
  %1843 = vmatmul.mubr.f32.gmra.mrb[0].mxu0 %v1557
  %v1844 = vpop.f32.mrb[0].mxu0
  %v1845 = vadd.f32 %v1678, %v1844
  %v1846 = vpop.f32.mrb[0].mxu0
  %v1847 = vadd.f32 %v1682, %v1846
  %1848 = vmatprep.mubr.f32.mxu0 %v1591
  %1849 = vmatmul.mubr.f32.gmra.mrb[0].mxu0 %v1558
  %v1850 = vpop.f32.mrb[0].mxu0
  %v1851 = vadd.f32 %v1678, %v1850
  %v1852 = vpop.f32.mrb[0].mxu0
  %v1853 = vadd.f32 %v1682, %v1852
  %1854 = vmatprep.mubr.f32.mxu0 %v1592
  %1855 = vmatmul.mubr.f32.gmra.mrb[0].mxu0 %v1559
  %v1856 = vpop.f32.mrb[0].mxu0
  %v1857 = vadd.f32 %v1678, %v1856
  %v1858 = vpop.f32.mrb[0].mxu0
  %v1859 = vadd.f32 %v1682, %v1858
  %1860 = vmatprep.mubr.f32.mxu0 %v1593
  %1861 = vmatmul.mubr.f32.gmra.mrb[0].mxu0 %v1560
  %v1862 = vpop.f32.mrb[0].mxu0
  %v1863 = vadd.f32 %v1678, %v1862
  %v1864 = vpop.f32.mrb[0].mxu0
  %v1865 = vadd.f32 %v1682, %v1864
  %1866 = vmatprep.mubr.f32.mxu0 %v1594
  %1867 = vmatmul.mubr.f32.gmra.mrb[0].mxu0 %v1561
  %v1868 = vpop.f32.mrb[0].mxu0
  %v1869 = vadd.f32 %v1678, %v1868
  %v1870 = vpop.f32.mrb[0].mxu0
  %v1871 = vadd.f32 %v1682, %v1870
  %1872 = vmatprep.mubr.f32.mxu0 %v1595
  %1873 = vmatmul.mubr.f32.gmra.mrb[0].mxu0 %v1562
  %v1874 = vpop.f32.mrb[0].mxu0
  %v1875 = vadd.f32 %v1678, %v1874
  %v1876 = vpop.f32.mrb[0].mxu0
  %v1877 = vadd.f32 %v1682, %v1876
  %1878 = vmatprep.mubr.f32.mxu0 %v1596
  %1879 = vmatmul.mubr.f32.gmra.mrb[0].mxu0 %v1563
  %v1880 = vpop.f32.mrb[0].mxu0
  %v1881 = vadd.f32 %v1678, %v1880
  %v1882 = vpop.f32.mrb[0].mxu0
  %v1883 = vadd.f32 %v1682, %v1882
  %1884 = vdwg.mxu0
  %1885 = vmatprep.subr.mxu0 %v1662
  %1886 = vmatpush1.msra.mxu0 %v1661
  %1887 = vmatprep.subr.mxu0 %v1664
  %1888 = vmatpush1.msra.mxu0 %v1663
  %1889 = vmatprep.subr.mxu0 %v1666
  %1890 = vmatpush1.msra.mxu0 %v1665
  %1891 = vmatprep.subr.mxu0 %v1668
  %1892 = vmatpush1.msra.mxu0 %v1667
  %1893 = vmatprep.subr.mxu0 %v1670
  %1894 = vmatpush1.msra.mxu0 %v1669
  %1895 = vmatprep.subr.mxu0 %v1722
  %1896 = vmatpush1.msra.mxu0 %v1719
  %1897 = vmatprep.subr.mxu0 0.0
  %1898 = vmatpush1.msra.mxu0 0.0
  %1899 = vmatprep.subr.mxu0 0.0
  %1900 = vmatpush1.msra.mxu0 0.0
  %1901 = vmatprep.subr.mxu0 0.0
  %1902 = vmatpush1.msra.mxu0 0.0
  %1903 = vmatprep.subr.mxu0 0.0
  %1904 = vmatpush1.msra.mxu0 0.0
  %1905 = vmatprep.subr.mxu0 0.0
  %1906 = vmatpush1.msra.mxu0 0.0
  %1907 = vmatprep.subr.mxu0 0.0
  %1908 = vmatpush1.msra.mxu0 0.0
  %1909 = vmatprep.subr.mxu0 0.0
  %1910 = vmatpush1.msra.mxu0 0.0
  %1911 = vmatprep.subr.mxu0 0.0
  %1912 = vmatpush1.msra.mxu0 0.0
  %1913 = vmatprep.subr.mxu0 0.0
  %1914 = vmatpush1.msra.mxu0 0.0
  %1915 = vmatprep.subr.mxu0 0.0
  %1916 = vmatpush1.msra.mxu0 0.0
  %1917 = vmatprep.subr.mxu0 0.0
  %1918 = vmatpush1.msra.mxu0 0.0
  %1919 = vmatprep.subr.mxu0 0.0
  %1920 = vmatpush1.msra.mxu0 0.0
  %1921 = vmatprep.subr.mxu0 0.0
  %1922 = vmatpush1.msra.mxu0 0.0
  %1923 = vmatprep.subr.mxu0 0.0
  %1924 = vmatpush1.msra.mxu0 0.0
  %1925 = vmatprep.subr.mxu0 0.0
  %1926 = vmatpush1.msra.mxu0 0.0
  %1927 = vmatprep.subr.mxu0 0.0
  %1928 = vmatpush1.msra.mxu0 0.0
  %1929 = vmatprep.subr.mxu0 0.0
  %1930 = vmatpush1.msra.mxu0 0.0
  %1931 = vmatprep.subr.mxu0 0.0
  %1932 = vmatpush1.msra.mxu0 0.0
  %1933 = vmatprep.subr.mxu0 0.0
  %1934 = vmatpush1.msra.mxu0 0.0
  %1935 = vmatprep.subr.mxu0 0.0
  %1936 = vmatpush1.msra.mxu0 0.0
  %1937 = vmatprep.subr.mxu0 0.0
  %1938 = vmatpush1.msra.mxu0 0.0
  %1939 = vmatprep.subr.mxu0 0.0
  %1940 = vmatpush1.msra.mxu0 0.0
  %1941 = vmatprep.subr.mxu0 0.0
  %1942 = vmatpush1.msra.mxu0 0.0
  %1943 = vmatprep.subr.mxu0 0.0
  %1944 = vmatpush1.msra.mxu0 0.0
  %1945 = vmatprep.subr.mxu0 0.0
  %1946 = vmatpush1.msra.mxu0 0.0
  %1947 = vmatprep.subr.mxu0 0.0
  %1948 = vmatpush1.msra.mxu0 0.0
  %1949 = vmatprep.mubr.f32.mxu0 0.0
  %1950 = vmatmul.mubr.f32.gmra.mrb[0].mxu0 %v1686
  %v1951 = vpop.f32.mrb[0].mxu0
  %v1952 = vadd.f32 %v1791, %v1951
  %v1953 = vpop.f32.mrb[0].mxu0
  %v1954 = vadd.f32 %v1793, %v1953
  %1955 = vmatprep.mubr.f32.mxu0 0.0
  %1956 = vmatmul.mubr.f32.gmra.mrb[0].mxu0 %v1688
  %v1957 = vpop.f32.mrb[0].mxu0
  %v1958 = vadd.f32 %v1797, %v1957
  %v1959 = vpop.f32.mrb[0].mxu0
  %v1960 = vadd.f32 %v1799, %v1959
  %1961 = vmatprep.mubr.f32.mxu0 0.0
  %1962 = vmatmul.mubr.f32.gmra.mrb[0].mxu0 %v1690
  %v1963 = vpop.f32.mrb[0].mxu0
  %v1964 = vadd.f32 %v1803, %v1963
  %v1965 = vpop.f32.mrb[0].mxu0
  %v1966 = vadd.f32 %v1805, %v1965
  %1967 = vmatprep.mubr.f32.mxu0 0.0
  %1968 = vmatmul.mubr.f32.gmra.mrb[0].mxu0 %v1692
  %v1969 = vpop.f32.mrb[0].mxu0
  %v1970 = vadd.f32 %v1809, %v1969
  %v1971 = vpop.f32.mrb[0].mxu0
  %v1972 = vadd.f32 %v1811, %v1971
  %1973 = vmatprep.mubr.f32.mxu0 0.0
  %1974 = vmatmul.mubr.f32.gmra.mrb[0].mxu0 %v1694
  %v1975 = vpop.f32.mrb[0].mxu0
  %v1976 = vadd.f32 %v1815, %v1975
  %v1977 = vpop.f32.mrb[0].mxu0
  %v1978 = vadd.f32 %v1817, %v1977
  %1979 = vmatprep.mubr.f32.mxu0 0.0
  %1980 = vmatmul.mubr.f32.gmra.mrb[0].mxu0 %v1696
  %v1981 = vpop.f32.mrb[0].mxu0
  %v1982 = vadd.f32 %v1821, %v1981
  %v1983 = vpop.f32.mrb[0].mxu0
  %v1984 = vadd.f32 %v1823, %v1983
  %1985 = vmatprep.mubr.f32.mxu0 0.0
  %1986 = vmatmul.mubr.f32.gmra.mrb[0].mxu0 %v1698
  %v1987 = vpop.f32.mrb[0].mxu0
  %v1988 = vadd.f32 %v1827, %v1987
  %v1989 = vpop.f32.mrb[0].mxu0
  %v1990 = vadd.f32 %v1829, %v1989
  %1991 = vmatprep.mubr.f32.mxu0 0.0
  %1992 = vmatmul.mubr.f32.gmra.mrb[0].mxu0 %v1700
  %v1993 = vpop.f32.mrb[0].mxu0
  %v1994 = vadd.f32 %v1833, %v1993
  %v1995 = vpop.f32.mrb[0].mxu0
  %v1996 = vadd.f32 %v1835, %v1995
  %1997 = vmatprep.mubr.f32.mxu0 0.0
  %1998 = vmatmul.mubr.f32.gmra.mrb[0].mxu0 %v1702
  %v1999 = vpop.f32.mrb[0].mxu0
  %v2000 = vadd.f32 %v1839, %v1999
  %v2001 = vpop.f32.mrb[0].mxu0
  %v2002 = vadd.f32 %v1841, %v2001
  %2003 = vmatprep.mubr.f32.mxu0 0.0
  %2004 = vmatmul.mubr.f32.gmra.mrb[0].mxu0 %v1704
  %v2005 = vpop.f32.mrb[0].mxu0
  %v2006 = vadd.f32 %v1845, %v2005
  %v2007 = vpop.f32.mrb[0].mxu0
  %v2008 = vadd.f32 %v1847, %v2007
  %2009 = vmatprep.mubr.f32.mxu0 0.0
  %2010 = vmatmul.mubr.f32.gmra.mrb[0].mxu0 %v1706
  %v2011 = vpop.f32.mrb[0].mxu0
  %v2012 = vadd.f32 %v1851, %v2011
  %v2013 = vpop.f32.mrb[0].mxu0
  %v2014 = vadd.f32 %v1853, %v2013
  %2015 = vmatprep.mubr.f32.mxu0 0.0
  %2016 = vmatmul.mubr.f32.gmra.mrb[0].mxu0 %v1708
  %v2017 = vpop.f32.mrb[0].mxu0
  %v2018 = vadd.f32 %v1857, %v2017
  %v2019 = vpop.f32.mrb[0].mxu0
  %v2020 = vadd.f32 %v1859, %v2019
  %2021 = vmatprep.mubr.f32.mxu0 0.0
  %2022 = vmatmul.mubr.f32.gmra.mrb[0].mxu0 %v1710
  %v2023 = vpop.f32.mrb[0].mxu0
  %v2024 = vadd.f32 %v1863, %v2023
  %v2025 = vpop.f32.mrb[0].mxu0
  %v2026 = vadd.f32 %v1865, %v2025
  %2027 = vmatprep.mubr.f32.mxu0 0.0
  %2028 = vmatmul.mubr.f32.gmra.mrb[0].mxu0 %v1712
  %v2029 = vpop.f32.mrb[0].mxu0
  %v2030 = vadd.f32 %v1869, %v2029
  %v2031 = vpop.f32.mrb[0].mxu0
  %v2032 = vadd.f32 %v1871, %v2031
  %2033 = vmatprep.mubr.f32.mxu0 0.0
  %2034 = vmatmul.mubr.f32.gmra.mrb[0].mxu0 %v1714
  %v2035 = vpop.f32.mrb[0].mxu0
  %v2036 = vadd.f32 %v1875, %v2035
  %v2037 = vpop.f32.mrb[0].mxu0
  %v2038 = vadd.f32 %v1877, %v2037
  %2039 = vmatprep.mubr.f32.mxu0 0.0
  %2040 = vmatmul.mubr.f32.gmra.mrb[0].mxu0 %v1716
  %v2041 = vpop.f32.mrb[0].mxu0
  %v2042 = vadd.f32 %v1881, %v2041
  %v2043 = vpop.f32.mrb[0].mxu0
  %v2044 = vadd.f32 %v1883, %v2043
  %2045 = vdwg.mxu0
  %vm2046 = vcmp.ge.f32.partialorder %v1952, 0.0
  %vm2047 = vcmp.ge.f32.partialorder %v1954, 0.0
  %vm2048 = vcmp.ge.f32.partialorder %v1958, 0.0
  %vm2049 = vcmp.ge.f32.partialorder %v1960, 0.0
  %vm2050 = vcmp.ge.f32.partialorder %v1964, 0.0
  %vm2051 = vcmp.ge.f32.partialorder %v1966, 0.0
  %vm2052 = vcmp.ge.f32.partialorder %v1970, 0.0
  %vm2053 = vcmp.ge.f32.partialorder %v1972, 0.0
  %vm2054 = vcmp.ge.f32.partialorder %v1976, 0.0
  %vm2055 = vcmp.ge.f32.partialorder %v1978, 0.0
  %vm2056 = vcmp.ge.f32.partialorder %v1982, 0.0
  %vm2057 = vcmp.ge.f32.partialorder %v1984, 0.0
  %vm2058 = vcmp.ge.f32.partialorder %v1988, 0.0
  %vm2059 = vcmp.ge.f32.partialorder %v1990, 0.0
  %vm2060 = vcmp.ge.f32.partialorder %v1994, 0.0
  %vm2061 = vcmp.ge.f32.partialorder %v1996, 0.0
  %vm2062 = vcmp.ge.f32.partialorder %v2000, 0.0
  %vm2063 = vcmp.ge.f32.partialorder %v2002, 0.0
  %vm2064 = vcmp.ge.f32.partialorder %v2006, 0.0
  %vm2065 = vcmp.ge.f32.partialorder %v2008, 0.0
  %vm2066 = vcmp.ge.f32.partialorder %v2012, 0.0
  %vm2067 = vcmp.ge.f32.partialorder %v2014, 0.0
  %vm2068 = vcmp.ge.f32.partialorder %v2018, 0.0
  %vm2069 = vcmp.ge.f32.partialorder %v2020, 0.0
  %vm2070 = vcmp.ge.f32.partialorder %v2024, 0.0
  %vm2071 = vcmp.ge.f32.partialorder %v2026, 0.0
  %vm2072 = vcmp.ge.f32.partialorder %v2030, 0.0
  %vm2073 = vcmp.ge.f32.partialorder %v2032, 0.0
  %vm2074 = vcmp.ge.f32.partialorder %v2036, 0.0
  %vm2075 = vcmp.ge.f32.partialorder %v2038, 0.0
  %vm2076 = vcmp.ge.f32.partialorder %v2042, 0.0
  %vm2077 = vcmp.ge.f32.partialorder %v2044, 0.0
  %v2078 = vmul.f32 %v1952, 0.01
  %v2079 = vmul.f32 %v1954, 0.01
  %v2080 = vmul.f32 %v1958, 0.01
  %v2081 = vmul.f32 %v1960, 0.01
  %v2082 = vmul.f32 %v1964, 0.01
  %v2083 = vmul.f32 %v1966, 0.01
  %v2084 = vmul.f32 %v1970, 0.01
  %v2085 = vmul.f32 %v1972, 0.01
  %v2086 = vmul.f32 %v1976, 0.01
  %v2087 = vmul.f32 %v1978, 0.01
  %v2088 = vmul.f32 %v1982, 0.01
  %v2089 = vmul.f32 %v1984, 0.01
  %v2090 = vmul.f32 %v1988, 0.01
  %v2091 = vmul.f32 %v1990, 0.01
  %v2092 = vmul.f32 %v1994, 0.01
  %v2093 = vmul.f32 %v1996, 0.01
  %v2094 = vmul.f32 %v2000, 0.01
  %v2095 = vmul.f32 %v2002, 0.01
  %v2096 = vmul.f32 %v2006, 0.01
  %v2097 = vmul.f32 %v2008, 0.01
  %v2098 = vmul.f32 %v2012, 0.01
  %v2099 = vmul.f32 %v2014, 0.01
  %v2100 = vmul.f32 %v2018, 0.01
  %v2101 = vmul.f32 %v2020, 0.01
  %v2102 = vmul.f32 %v2024, 0.01
  %v2103 = vmul.f32 %v2026, 0.01
  %v2104 = vmul.f32 %v2030, 0.01
  %v2105 = vmul.f32 %v2032, 0.01
  %v2106 = vmul.f32 %v2036, 0.01
  %v2107 = vmul.f32 %v2038, 0.01
  %v2108 = vmul.f32 %v2042, 0.01
  %v2109 = vmul.f32 %v2044, 0.01
  %v2110 = vsel %vm2046, %v1952, %v2078
  %v2111 = vsel %vm2047, %v1954, %v2079
  %v2112 = vsel %vm2048, %v1958, %v2080
  %v2113 = vsel %vm2049, %v1960, %v2081
  %v2114 = vsel %vm2050, %v1964, %v2082
  %v2115 = vsel %vm2051, %v1966, %v2083
  %v2116 = vsel %vm2052, %v1970, %v2084
  %v2117 = vsel %vm2053, %v1972, %v2085
  %v2118 = vsel %vm2054, %v1976, %v2086
  %v2119 = vsel %vm2055, %v1978, %v2087
  %v2120 = vsel %vm2056, %v1982, %v2088
  %v2121 = vsel %vm2057, %v1984, %v2089
  %v2122 = vsel %vm2058, %v1988, %v2090
  %v2123 = vsel %vm2059, %v1990, %v2091
  %v2124 = vsel %vm2060, %v1994, %v2092
  %v2125 = vsel %vm2061, %v1996, %v2093
  %v2126 = vsel %vm2062, %v2000, %v2094
  %v2127 = vsel %vm2063, %v2002, %v2095
  %v2128 = vsel %vm2064, %v2006, %v2096
  %v2129 = vsel %vm2065, %v2008, %v2097
  %v2130 = vsel %vm2066, %v2012, %v2098
  %v2131 = vsel %vm2067, %v2014, %v2099
  %v2132 = vsel %vm2068, %v2018, %v2100
  %v2133 = vsel %vm2069, %v2020, %v2101
  %v2134 = vsel %vm2070, %v2024, %v2102
  %v2135 = vsel %vm2071, %v2026, %v2103
  %v2136 = vsel %vm2072, %v2030, %v2104
  %v2137 = vsel %vm2073, %v2032, %v2105
  %v2138 = vsel %vm2074, %v2036, %v2106
  %v2139 = vsel %vm2075, %v2038, %v2107
  %v2140 = vsel %vm2076, %v2042, %v2108
  %v2141 = vsel %vm2077, %v2044, %v2109
  %v2142 = vld [vmem:[%s6] sm:$0xff]
  %v2143 = vld [vmem:[%s6 + $0x8] sm:$0xff]
  %v2144 = vld [vmem:[%s6 + $0x10] sm:$0xff]
  %v2145 = vld [vmem:[%s6 + $0x18] sm:$0xff]
  %v2146 = vld [vmem:[%s6 + $0x20] sm:$0xff]
  %v2147 = vld [vmem:[%s6 + $0x28] sm:$0xff]
  %v2148 = vld [vmem:[%s6 + $0x30] sm:$0xff]
  %v2149 = vld [vmem:[%s6 + $0x38] sm:$0xff]
  %v2150 = vld [vmem:[%s6 + $0x40] sm:$0xff]
  %v2151 = vld [vmem:[%s6 + $0x48] sm:$0xff]
  %v2152 = vld [vmem:[%s6 + $0x50] sm:$0xff]
  %v2153 = vld [vmem:[%s6 + $0x58] sm:$0xff]
  %v2154 = vld [vmem:[%s6 + $0x60] sm:$0xff]
  %v2155 = vld [vmem:[%s6 + $0x68] sm:$0xff]
  %v2156 = vld [vmem:[%s6 + $0x70] sm:$0xff]
  %v2157 = vld [vmem:[%s6 + $0x78] sm:$0xff]
  %v2158 = vld [vmem:[%s6 + $0x80] sm:$0xf]
  %vm2159 = vcmask 31744
  %v2161 = vsel %vm2159, %v2111, 0
  %v2164 = vsel %vm2159, %v2113, 0
  %v2167 = vsel %vm2159, %v2115, 0
  %v2170 = vsel %vm2159, %v2117, 0
  %v2173 = vsel %vm2159, %v2119, 0
  %v2176 = vsel %vm2159, %v2121, 0
  %v2179 = vsel %vm2159, %v2123, 0
  %v2182 = vsel %vm2159, %v2125, 0
  %v2185 = vsel %vm2159, %v2127, 0
  %v2188 = vsel %vm2159, %v2129, 0
  %v2191 = vsel %vm2159, %v2131, 0
  %v2194 = vsel %vm2159, %v2133, 0
  %v2197 = vsel %vm2159, %v2135, 0
  %v2200 = vsel %vm2159, %v2137, 0
  %v2203 = vsel %vm2159, %v2139, 0
  %v2206 = vsel %vm2159, %v2141, 0
  %v2209 = vsel %vm1300, %v2158, 0
  %2211 = vmatprep.subr.mxu0 0.0
  %2212 = vmatpush1.msra.mxu0 %v2142
  %2213 = vmatprep.subr.mxu0 0.0
  %2214 = vmatpush1.msra.mxu0 %v2143
  %2215 = vmatprep.subr.mxu0 0.0
  %2216 = vmatpush1.msra.mxu0 %v2144
  %2217 = vmatprep.subr.mxu0 0.0
  %2218 = vmatpush1.msra.mxu0 %v2145
  %2219 = vmatprep.subr.mxu0 0.0
  %2220 = vmatpush1.msra.mxu0 %v2146
  %2221 = vmatprep.subr.mxu0 0.0
  %2222 = vmatpush1.msra.mxu0 %v2147
  %2223 = vmatprep.subr.mxu0 0.0
  %2224 = vmatpush1.msra.mxu0 %v2148
  %2225 = vmatprep.subr.mxu0 0.0
  %2226 = vmatpush1.msra.mxu0 %v2149
  %2227 = vmatprep.subr.mxu0 0.0
  %2228 = vmatpush1.msra.mxu0 %v2150
  %2229 = vmatprep.subr.mxu0 0.0
  %2230 = vmatpush1.msra.mxu0 %v2151
  %2231 = vmatprep.subr.mxu0 0.0
  %2232 = vmatpush1.msra.mxu0 %v2152
  %2233 = vmatprep.subr.mxu0 0.0
  %2234 = vmatpush1.msra.mxu0 %v2153
  %2235 = vmatprep.subr.mxu0 0.0
  %2236 = vmatpush1.msra.mxu0 %v2154
  %2237 = vmatprep.subr.mxu0 0.0
  %2238 = vmatpush1.msra.mxu0 %v2155
  %2239 = vmatprep.subr.mxu0 0.0
  %2240 = vmatpush1.msra.mxu0 %v2156
  %2241 = vmatprep.subr.mxu0 0.0
  %2242 = vmatpush1.msra.mxu0 %v2157
  %2243 = vmatprep.subr.mxu0 0.0
  %2244 = vmatpush1.msra.mxu0 %v2209
  %2245 = vmatprep.subr.mxu0 0.0
  %2246 = vmatpush1.msra.mxu0 0.0
  %2247 = vmatprep.subr.mxu0 0.0
  %2248 = vmatpush1.msra.mxu0 0.0
  %2249 = vmatprep.subr.mxu0 0.0
  %2250 = vmatpush1.msra.mxu0 0.0
  %2251 = vmatprep.subr.mxu0 0.0
  %2252 = vmatpush1.msra.mxu0 0.0
  %2253 = vmatprep.subr.mxu0 0.0
  %2254 = vmatpush1.msra.mxu0 0.0
  %2255 = vmatprep.subr.mxu0 0.0
  %2256 = vmatpush1.msra.mxu0 0.0
  %2257 = vmatprep.subr.mxu0 0.0
  %2258 = vmatpush1.msra.mxu0 0.0
  %2259 = vmatprep.subr.mxu0 0.0
  %2260 = vmatpush1.msra.mxu0 0.0
  %2261 = vmatprep.subr.mxu0 0.0
  %2262 = vmatpush1.msra.mxu0 0.0
  %2263 = vmatprep.subr.mxu0 0.0
  %2264 = vmatpush1.msra.mxu0 0.0
  %2265 = vmatprep.subr.mxu0 0.0
  %2266 = vmatpush1.msra.mxu0 0.0
  %2267 = vmatprep.subr.mxu0 0.0
  %2268 = vmatpush1.msra.mxu0 0.0
  %2269 = vmatprep.subr.mxu0 0.0
  %2270 = vmatpush1.msra.mxu0 0.0
  %2271 = vmatprep.subr.mxu0 0.0
  %2272 = vmatpush1.msra.mxu0 0.0
  %2273 = vmatprep.subr.mxu0 0.0
  %2274 = vmatpush1.msra.mxu0 0.0
  %2275 = vmatprep.mubr.f32.mxu0 %v2161
  %2276 = vmatmul.mubr.f32.gmra.mrb[0].mxu0 %v2110
  %v2277 = vpop.f32.mrb[0].mxu0
  %v2278 = vadd.f32 0.0, %v2277
  %v2279 = vpop.f32.mrb[0].mxu0
  %2280 = vmatprep.mubr.f32.mxu0 %v2164
  %2281 = vmatmul.mubr.f32.gmra.mrb[0].mxu0 %v2112
  %v2282 = vpop.f32.mrb[0].mxu0
  %v2283 = vadd.f32 0.0, %v2282
  %v2284 = vpop.f32.mrb[0].mxu0
  %2285 = vmatprep.mubr.f32.mxu0 %v2167
  %2286 = vmatmul.mubr.f32.gmra.mrb[0].mxu0 %v2114
  %v2287 = vpop.f32.mrb[0].mxu0
  %v2288 = vadd.f32 0.0, %v2287
  %v2289 = vpop.f32.mrb[0].mxu0
  %2290 = vmatprep.mubr.f32.mxu0 %v2170
  %2291 = vmatmul.mubr.f32.gmra.mrb[0].mxu0 %v2116
  %v2292 = vpop.f32.mrb[0].mxu0
  %v2293 = vadd.f32 0.0, %v2292
  %v2294 = vpop.f32.mrb[0].mxu0
  %2295 = vmatprep.mubr.f32.mxu0 %v2173
  %2296 = vmatmul.mubr.f32.gmra.mrb[0].mxu0 %v2118
  %v2297 = vpop.f32.mrb[0].mxu0
  %v2298 = vadd.f32 0.0, %v2297
  %v2299 = vpop.f32.mrb[0].mxu0
  %2300 = vmatprep.mubr.f32.mxu0 %v2176
  %2301 = vmatmul.mubr.f32.gmra.mrb[0].mxu0 %v2120
  %v2302 = vpop.f32.mrb[0].mxu0
  %v2303 = vadd.f32 0.0, %v2302
  %v2304 = vpop.f32.mrb[0].mxu0
  %2305 = vmatprep.mubr.f32.mxu0 %v2179
  %2306 = vmatmul.mubr.f32.gmra.mrb[0].mxu0 %v2122
  %v2307 = vpop.f32.mrb[0].mxu0
  %v2308 = vadd.f32 0.0, %v2307
  %v2309 = vpop.f32.mrb[0].mxu0
  %2310 = vmatprep.mubr.f32.mxu0 %v2182
  %2311 = vmatmul.mubr.f32.gmra.mrb[0].mxu0 %v2124
  %v2312 = vpop.f32.mrb[0].mxu0
  %v2313 = vadd.f32 0.0, %v2312
  %v2314 = vpop.f32.mrb[0].mxu0
  %2315 = vmatprep.mubr.f32.mxu0 %v2185
  %2316 = vmatmul.mubr.f32.gmra.mrb[0].mxu0 %v2126
  %v2317 = vpop.f32.mrb[0].mxu0
  %v2318 = vadd.f32 0.0, %v2317
  %v2319 = vpop.f32.mrb[0].mxu0
  %2320 = vmatprep.mubr.f32.mxu0 %v2188
  %2321 = vmatmul.mubr.f32.gmra.mrb[0].mxu0 %v2128
  %v2322 = vpop.f32.mrb[0].mxu0
  %v2323 = vadd.f32 0.0, %v2322
  %v2324 = vpop.f32.mrb[0].mxu0
  %2325 = vmatprep.mubr.f32.mxu0 %v2191
  %2326 = vmatmul.mubr.f32.gmra.mrb[0].mxu0 %v2130
  %v2327 = vpop.f32.mrb[0].mxu0
  %v2328 = vadd.f32 0.0, %v2327
  %v2329 = vpop.f32.mrb[0].mxu0
  %2330 = vmatprep.mubr.f32.mxu0 %v2194
  %2331 = vmatmul.mubr.f32.gmra.mrb[0].mxu0 %v2132
  %v2332 = vpop.f32.mrb[0].mxu0
  %v2333 = vadd.f32 0.0, %v2332
  %v2334 = vpop.f32.mrb[0].mxu0
  %2335 = vmatprep.mubr.f32.mxu0 %v2197
  %2336 = vmatmul.mubr.f32.gmra.mrb[0].mxu0 %v2134
  %v2337 = vpop.f32.mrb[0].mxu0
  %v2338 = vadd.f32 0.0, %v2337
  %v2339 = vpop.f32.mrb[0].mxu0
  %2340 = vmatprep.mubr.f32.mxu0 %v2200
  %2341 = vmatmul.mubr.f32.gmra.mrb[0].mxu0 %v2136
  %v2342 = vpop.f32.mrb[0].mxu0
  %v2343 = vadd.f32 0.0, %v2342
  %v2344 = vpop.f32.mrb[0].mxu0
  %2345 = vmatprep.mubr.f32.mxu0 %v2203
  %2346 = vmatmul.mubr.f32.gmra.mrb[0].mxu0 %v2138
  %v2347 = vpop.f32.mrb[0].mxu0
  %v2348 = vadd.f32 0.0, %v2347
  %v2349 = vpop.f32.mrb[0].mxu0
  %2350 = vmatprep.mubr.f32.mxu0 %v2206
  %2351 = vmatmul.mubr.f32.gmra.mrb[0].mxu0 %v2140
  %v2352 = vpop.f32.mrb[0].mxu0
  %v2353 = vadd.f32 0.0, %v2352
  %v2354 = vpop.f32.mrb[0].mxu0
  %2355 = vdwg.mxu0
  %2372 = vrot.lane.b32.xlu0 %v2278, 68
  %v2373 = vpop.permute.xlu0 %2372
  %2374 = vrot.lane.b32.xlu0 %v2283, 68
  %v2375 = vpop.permute.xlu0 %2374
  %2376 = vrot.lane.b32.xlu0 %v2288, 68
  %v2377 = vpop.permute.xlu0 %2376
  %2378 = vrot.lane.b32.xlu0 %v2293, 68
  %v2379 = vpop.permute.xlu0 %2378
  %2380 = vrot.lane.b32.xlu0 %v2298, 68
  %v2381 = vpop.permute.xlu0 %2380
  %2382 = vrot.lane.b32.xlu0 %v2303, 68
  %v2383 = vpop.permute.xlu0 %2382
  %2384 = vrot.lane.b32.xlu0 %v2308, 68
  %v2385 = vpop.permute.xlu0 %2384
  %2386 = vrot.lane.b32.xlu0 %v2313, 68
  %v2387 = vpop.permute.xlu0 %2386
  %2388 = vrot.lane.b32.xlu0 %v2318, 68
  %v2389 = vpop.permute.xlu0 %2388
  %2390 = vrot.lane.b32.xlu0 %v2323, 68
  %v2391 = vpop.permute.xlu0 %2390
  %2392 = vrot.lane.b32.xlu0 %v2328, 68
  %v2393 = vpop.permute.xlu0 %2392
  %2394 = vrot.lane.b32.xlu0 %v2333, 68
  %v2395 = vpop.permute.xlu0 %2394
  %2396 = vrot.lane.b32.xlu0 %v2338, 68
  %v2397 = vpop.permute.xlu0 %2396
  %2398 = vrot.lane.b32.xlu0 %v2343, 68
  %v2399 = vpop.permute.xlu0 %2398
  %2400 = vrot.lane.b32.xlu0 %v2348, 68
  %v2401 = vpop.permute.xlu0 %2400
  %2402 = vrot.lane.b32.xlu0 %v2353, 68
  %v2403 = vpop.permute.xlu0 %2402
  %v2420 = vmax.f32 %v2278, %v2373
  %v2421 = vmax.f32 %v2283, %v2375
  %v2422 = vmax.f32 %v2288, %v2377
  %v2423 = vmax.f32 %v2293, %v2379
  %v2424 = vmax.f32 %v2298, %v2381
  %v2425 = vmax.f32 %v2303, %v2383
  %v2426 = vmax.f32 %v2308, %v2385
  %v2427 = vmax.f32 %v2313, %v2387
  %v2428 = vmax.f32 %v2318, %v2389
  %v2429 = vmax.f32 %v2323, %v2391
  %v2430 = vmax.f32 %v2328, %v2393
  %v2431 = vmax.f32 %v2333, %v2395
  %v2432 = vmax.f32 %v2338, %v2397
  %v2433 = vmax.f32 %v2343, %v2399
  %v2434 = vmax.f32 %v2348, %v2401
  %v2435 = vmax.f32 %v2353, %v2403
  %v2452 = vrot.slane %v2420, 1
  %v2453 = vrot.slane %v2421, 1
  %v2454 = vsel %vm113, %v2452, %v2453
  %v2455 = vrot.slane %v2422, 1
  %v2456 = vsel %vm113, %v2453, %v2455
  %v2457 = vrot.slane %v2423, 1
  %v2458 = vsel %vm113, %v2455, %v2457
  %v2459 = vrot.slane %v2424, 1
  %v2460 = vsel %vm113, %v2457, %v2459
  %v2461 = vrot.slane %v2425, 1
  %v2462 = vsel %vm113, %v2459, %v2461
  %v2463 = vrot.slane %v2426, 1
  %v2464 = vsel %vm113, %v2461, %v2463
  %v2465 = vrot.slane %v2427, 1
  %v2466 = vsel %vm113, %v2463, %v2465
  %v2467 = vrot.slane %v2428, 1
  %v2468 = vsel %vm113, %v2465, %v2467
  %v2469 = vrot.slane %v2429, 1
  %v2470 = vsel %vm113, %v2467, %v2469
  %v2471 = vrot.slane %v2430, 1
  %v2472 = vsel %vm113, %v2469, %v2471
  %v2473 = vrot.slane %v2431, 1
  %v2474 = vsel %vm113, %v2471, %v2473
  %v2475 = vrot.slane %v2432, 1
  %v2476 = vsel %vm113, %v2473, %v2475
  %v2477 = vrot.slane %v2433, 1
  %v2478 = vsel %vm113, %v2475, %v2477
  %v2479 = vrot.slane %v2434, 1
  %v2480 = vsel %vm113, %v2477, %v2479
  %v2481 = vrot.slane %v2435, 1
  %v2482 = vsel %vm113, %v2479, %v2481
  %v2499 = vsel %vm113, %v2481, 0.0
  %v2500 = vmax.f32 %v2420, %v2454
  %v2501 = vmax.f32 %v2421, %v2456
  %v2502 = vmax.f32 %v2422, %v2458
  %v2503 = vmax.f32 %v2423, %v2460
  %v2504 = vmax.f32 %v2424, %v2462
  %v2505 = vmax.f32 %v2425, %v2464
  %v2506 = vmax.f32 %v2426, %v2466
  %v2507 = vmax.f32 %v2427, %v2468
  %v2508 = vmax.f32 %v2428, %v2470
  %v2509 = vmax.f32 %v2429, %v2472
  %v2510 = vmax.f32 %v2430, %v2474
  %v2511 = vmax.f32 %v2431, %v2476
  %v2512 = vmax.f32 %v2432, %v2478
  %v2513 = vmax.f32 %v2433, %v2480
  %v2514 = vmax.f32 %v2434, %v2482
  %v2515 = vmax.f32 %v2435, %v2499
  %v2524 = vrot.slane %v2502, 7
  %vm2525 = vcmask 1041409
  %v2526 = vsel %vm2525, %v2524, %v2500
  %v2527 = vrot.slane %v2504, 6
  %vm2528 = vcmask 1042434
  %v2529 = vsel %vm2528, %v2527, %v2526
  %v2530 = vrot.slane %v2506, 5
  %vm2531 = vcmask 1043459
  %v2532 = vsel %vm2531, %v2530, %v2529
  %v2533 = vrot.slane %v2508, 4
  %vm2534 = vcmask 1044484
  %v2535 = vsel %vm2534, %v2533, %v2532
  %v2536 = vrot.slane %v2510, 3
  %vm2537 = vcmask 1045509
  %v2538 = vsel %vm2537, %v2536, %v2535
  %v2539 = vrot.slane %v2512, 2
  %vm2540 = vcmask 1046534
  %v2541 = vsel %vm2540, %v2539, %v2538
  %v2542 = vrot.slane %v2514, 1
  %vm2543 = vcmask 1047559
  %v2544 = vsel %vm2543, %v2542, %v2541
  %v2546 = vrot.slane %v2500, 2
  %v2547 = vrot.slane %v2502, 1
  %v2548 = vsel %vm2525, %v2547, %v2546
  %v2549 = vsel %vm2528, %v2504, %v2548
  %v2550 = vrot.slane %v2506, 7
  %v2551 = vsel %vm2531, %v2550, %v2549
  %v2552 = vrot.slane %v2508, 6
  %v2553 = vsel %vm2534, %v2552, %v2551
  %v2554 = vrot.slane %v2510, 5
  %v2555 = vsel %vm2537, %v2554, %v2553
  %v2556 = vrot.slane %v2512, 4
  %v2557 = vsel %vm2540, %v2556, %v2555
  %v2558 = vrot.slane %v2514, 3
  %v2559 = vsel %vm2543, %v2558, %v2557
  %2560 = vrot.lane.b32.xlu0 %v2559, 60
  %v2561 = vpop.permute.xlu0 %2560
  %v2563 = vrot.slane %v2500, 4
  %v2564 = vrot.slane %v2502, 3
  %v2565 = vsel %vm2525, %v2564, %v2563
  %v2566 = vrot.slane %v2504, 2
  %v2567 = vsel %vm2528, %v2566, %v2565
  %v2568 = vrot.slane %v2506, 1
  %v2569 = vsel %vm2531, %v2568, %v2567
  %v2570 = vsel %vm2534, %v2508, %v2569
  %v2571 = vrot.slane %v2510, 7
  %v2572 = vsel %vm2537, %v2571, %v2570
  %v2573 = vrot.slane %v2512, 6
  %v2574 = vsel %vm2540, %v2573, %v2572
  %v2575 = vrot.slane %v2514, 5
  %v2576 = vsel %vm2543, %v2575, %v2574
  %2577 = vrot.lane.b32.xlu0 %v2576, 120
  %v2578 = vpop.permute.xlu0 %2577
  %v2580 = vrot.slane %v2500, 6
  %v2581 = vrot.slane %v2502, 5
  %v2582 = vsel %vm2525, %v2581, %v2580
  %v2583 = vrot.slane %v2504, 4
  %v2584 = vsel %vm2528, %v2583, %v2582
  %v2585 = vrot.slane %v2506, 3
  %v2586 = vsel %vm2531, %v2585, %v2584
  %v2587 = vrot.slane %v2508, 2
  %v2588 = vsel %vm2534, %v2587, %v2586
  %v2589 = vrot.slane %v2510, 1
  %v2590 = vsel %vm2537, %v2589, %v2588
  %v2591 = vsel %vm2540, %v2512, %v2590
  %v2592 = vrot.slane %v2514, 7
  %v2593 = vsel %vm2543, %v2592, %v2591
  %2594 = vrot.lane.b32.xlu0 %v2593, 52
  %v2595 = vpop.permute.xlu0 %2594
  %v2605 = vrot.slane %v2503, 7
  %v2606 = vsel %vm2525, %v2605, %v2501
  %v2607 = vrot.slane %v2505, 6
  %v2608 = vsel %vm2528, %v2607, %v2606
  %v2609 = vrot.slane %v2507, 5
  %v2610 = vsel %vm2531, %v2609, %v2608
  %v2611 = vrot.slane %v2509, 4
  %v2612 = vsel %vm2534, %v2611, %v2610
  %v2613 = vrot.slane %v2511, 3
  %v2614 = vsel %vm2537, %v2613, %v2612
  %v2615 = vrot.slane %v2513, 2
  %v2616 = vsel %vm2540, %v2615, %v2614
  %v2617 = vrot.slane %v2515, 1
  %v2618 = vsel %vm2543, %v2617, %v2616
  %2619 = vrot.lane.b32.xlu0 %v2618, 112
  %v2620 = vpop.permute.xlu0 %2619
  %v2622 = vsel %vm1530, %v2544, %v2561
  %v2623 = vsel %vm1547, %v2622, %v2578
  %v2624 = vsel %vm1564, %v2578, %v2595
  %v2625 = vsel %vm261, %v2624, %v2620
  %v2626 = vld [vmem:[%s7] sm:$0xff]
  %v2627 = vld [vmem:[%s7 + $0x8] sm:$0xff]
  %v2628 = vld [vmem:[%s7 + $0x10] sm:$0xff]
  %v2629 = vld [vmem:[%s7 + $0x18] sm:$0xff]
  %v2630 = vld [vmem:[%s7 + $0x20] sm:$0xff]
  %v2631 = vld [vmem:[%s7 + $0x28] sm:$0xff]
  %v2632 = vld [vmem:[%s7 + $0x30] sm:$0xff]
  %v2633 = vld [vmem:[%s7 + $0x38] sm:$0xff]
  %v2634 = vld [vmem:[%s7 + $0x40] sm:$0xff]
  %v2635 = vld [vmem:[%s7 + $0x48] sm:$0xff]
  %v2636 = vld [vmem:[%s7 + $0x50] sm:$0xff]
  %v2637 = vld [vmem:[%s7 + $0x58] sm:$0xff]
  %v2638 = vld [vmem:[%s7 + $0x60] sm:$0xff]
  %v2639 = vld [vmem:[%s7 + $0x68] sm:$0xff]
  %v2640 = vld [vmem:[%s7 + $0x70] sm:$0xff]
  %v2641 = vld [vmem:[%s7 + $0x78] sm:$0xff]
  %v2642 = vld [vmem:[%s7 + $0x80] sm:$0xff]
  %v2643 = vld [vmem:[%s7 + $0x88] sm:$0xff]
  %v2644 = vld [vmem:[%s7 + $0x90] sm:$0xff]
  %v2645 = vld [vmem:[%s7 + $0x98] sm:$0xff]
  %v2646 = vld [vmem:[%s7 + $0xa0] sm:$0xff]
  %v2647 = vld [vmem:[%s7 + $0xa8] sm:$0xff]
  %v2648 = vld [vmem:[%s7 + $0xb0] sm:$0xff]
  %v2649 = vld [vmem:[%s7 + $0xb8] sm:$0xff]
  %v2650 = vld [vmem:[%s7 + $0xc0] sm:$0xff]
  %v2651 = vld [vmem:[%s7 + $0xc8] sm:$0xff]
  %v2652 = vld [vmem:[%s7 + $0xd0] sm:$0xff]
  %v2653 = vld [vmem:[%s7 + $0xd8] sm:$0xff]
  %v2654 = vld [vmem:[%s7 + $0xe0] sm:$0xff]
  %v2655 = vld [vmem:[%s7 + $0xe8] sm:$0xff]
  %v2656 = vld [vmem:[%s7 + $0xf0] sm:$0xff]
  %v2657 = vld [vmem:[%s7 + $0xf8] sm:$0xff]
  %v2658 = vld [vmem:[%s7 + $0x100] sm:$0xff]
  %v2659 = vld [vmem:[%s7 + $0x108] sm:$0xff]
  %v2660 = vld [vmem:[%s7 + $0x110] sm:$0xff]
  %v2661 = vld [vmem:[%s7 + $0x118] sm:$0xff]
  %v2662 = vld [vmem:[%s7 + $0x120] sm:$0xff]
  %v2663 = vld [vmem:[%s7 + $0x128] sm:$0xf]
  %v2664 = vld [vmem:[%s8] sm:$0x1]
  %v2666 = vlaneseq
  %v2667 = vshrl.u32 %v2666, 7
  %v2668 = vsub.s32 0, %v2667
  %v2669 = vrot.slane %v2664, %v2668
  %v2671 = vsel %vm1685, %v2620, 0
  %v2674 = vsel %vm1300, %v2663, 0
  %2676 = vmatprep.subr.mxu0 0.0
  %2677 = vmatpush1.msra.mxu0 %v2626
  %2678 = vmatprep.subr.mxu0 0.0
  %2679 = vmatpush1.msra.mxu0 %v2627
  %2680 = vmatprep.subr.mxu0 0.0
  %2681 = vmatpush1.msra.mxu0 %v2628
  %2682 = vmatprep.subr.mxu0 0.0
  %2683 = vmatpush1.msra.mxu0 %v2629
  %2684 = vmatprep.subr.mxu0 0.0
  %2685 = vmatpush1.msra.mxu0 %v2630
  %2686 = vmatprep.subr.mxu0 0.0
  %2687 = vmatpush1.msra.mxu0 %v2631
  %2688 = vmatprep.subr.mxu0 0.0
  %2689 = vmatpush1.msra.mxu0 %v2632
  %2690 = vmatprep.subr.mxu0 0.0
  %2691 = vmatpush1.msra.mxu0 %v2633
  %2692 = vmatprep.subr.mxu0 0.0
  %2693 = vmatpush1.msra.mxu0 %v2634
  %2694 = vmatprep.subr.mxu0 0.0
  %2695 = vmatpush1.msra.mxu0 %v2635
  %2696 = vmatprep.subr.mxu0 0.0
  %2697 = vmatpush1.msra.mxu0 %v2636
  %2698 = vmatprep.subr.mxu0 0.0
  %2699 = vmatpush1.msra.mxu0 %v2637
  %2700 = vmatprep.subr.mxu0 0.0
  %2701 = vmatpush1.msra.mxu0 %v2638
  %2702 = vmatprep.subr.mxu0 0.0
  %2703 = vmatpush1.msra.mxu0 %v2639
  %2704 = vmatprep.subr.mxu0 0.0
  %2705 = vmatpush1.msra.mxu0 %v2640
  %2706 = vmatprep.subr.mxu0 0.0
  %2707 = vmatpush1.msra.mxu0 %v2641
  %2708 = vmatprep.subr.mxu0 0.0
  %2709 = vmatpush1.msra.mxu0 %v2642
  %2710 = vmatprep.subr.mxu0 0.0
  %2711 = vmatpush1.msra.mxu0 %v2643
  %2712 = vmatprep.subr.mxu0 0.0
  %2713 = vmatpush1.msra.mxu0 %v2644
  %2714 = vmatprep.subr.mxu0 0.0
  %2715 = vmatpush1.msra.mxu0 %v2645
  %2716 = vmatprep.subr.mxu0 0.0
  %2717 = vmatpush1.msra.mxu0 %v2646
  %2718 = vmatprep.subr.mxu0 0.0
  %2719 = vmatpush1.msra.mxu0 %v2647
  %2720 = vmatprep.subr.mxu0 0.0
  %2721 = vmatpush1.msra.mxu0 %v2648
  %2722 = vmatprep.subr.mxu0 0.0
  %2723 = vmatpush1.msra.mxu0 %v2649
  %2724 = vmatprep.subr.mxu0 0.0
  %2725 = vmatpush1.msra.mxu0 %v2650
  %2726 = vmatprep.subr.mxu0 0.0
  %2727 = vmatpush1.msra.mxu0 %v2651
  %2728 = vmatprep.subr.mxu0 0.0
  %2729 = vmatpush1.msra.mxu0 %v2652
  %2730 = vmatprep.subr.mxu0 0.0
  %2731 = vmatpush1.msra.mxu0 %v2653
  %2732 = vmatprep.subr.mxu0 0.0
  %2733 = vmatpush1.msra.mxu0 %v2654
  %2734 = vmatprep.subr.mxu0 0.0
  %2735 = vmatpush1.msra.mxu0 %v2655
  %2736 = vmatprep.subr.mxu0 0.0
  %2737 = vmatpush1.msra.mxu0 %v2656
  %2738 = vmatprep.subr.mxu0 0.0
  %2739 = vmatpush1.msra.mxu0 %v2657
  %2740 = vmatprep.mubr.f32.mxu0 %v2625
  %2741 = vmatmul.mubr.f32.gmra.mrb[0].mxu0 %v2623
  %v2742 = vpop.f32.mrb[0].mxu0
  %v2743 = vadd.f32 %v2669, %v2742
  %v2744 = vpop.f32.mrb[0].mxu0
  %2745 = vdwg.mxu0
  %2746 = vmatprep.subr.mxu0 0.0
  %2747 = vmatpush1.msra.mxu0 %v2658
  %2748 = vmatprep.subr.mxu0 0.0
  %2749 = vmatpush1.msra.mxu0 %v2659
  %2750 = vmatprep.subr.mxu0 0.0
  %2751 = vmatpush1.msra.mxu0 %v2660
  %2752 = vmatprep.subr.mxu0 0.0
  %2753 = vmatpush1.msra.mxu0 %v2661
  %2754 = vmatprep.subr.mxu0 0.0
  %2755 = vmatpush1.msra.mxu0 %v2662
  %2756 = vmatprep.subr.mxu0 0.0
  %2757 = vmatpush1.msra.mxu0 %v2674
  %2758 = vmatprep.subr.mxu0 0.0
  %2759 = vmatpush1.msra.mxu0 0.0
  %2760 = vmatprep.subr.mxu0 0.0
  %2761 = vmatpush1.msra.mxu0 0.0
  %2762 = vmatprep.subr.mxu0 0.0
  %2763 = vmatpush1.msra.mxu0 0.0
  %2764 = vmatprep.subr.mxu0 0.0
  %2765 = vmatpush1.msra.mxu0 0.0
  %2766 = vmatprep.subr.mxu0 0.0
  %2767 = vmatpush1.msra.mxu0 0.0
  %2768 = vmatprep.subr.mxu0 0.0
  %2769 = vmatpush1.msra.mxu0 0.0
  %2770 = vmatprep.subr.mxu0 0.0
  %2771 = vmatpush1.msra.mxu0 0.0
  %2772 = vmatprep.subr.mxu0 0.0
  %2773 = vmatpush1.msra.mxu0 0.0
  %2774 = vmatprep.subr.mxu0 0.0
  %2775 = vmatpush1.msra.mxu0 0.0
  %2776 = vmatprep.subr.mxu0 0.0
  %2777 = vmatpush1.msra.mxu0 0.0
  %2778 = vmatprep.subr.mxu0 0.0
  %2779 = vmatpush1.msra.mxu0 0.0
  %2780 = vmatprep.subr.mxu0 0.0
  %2781 = vmatpush1.msra.mxu0 0.0
  %2782 = vmatprep.subr.mxu0 0.0
  %2783 = vmatpush1.msra.mxu0 0.0
  %2784 = vmatprep.subr.mxu0 0.0
  %2785 = vmatpush1.msra.mxu0 0.0
  %2786 = vmatprep.subr.mxu0 0.0
  %2787 = vmatpush1.msra.mxu0 0.0
  %2788 = vmatprep.subr.mxu0 0.0
  %2789 = vmatpush1.msra.mxu0 0.0
  %2790 = vmatprep.subr.mxu0 0.0
  %2791 = vmatpush1.msra.mxu0 0.0
  %2792 = vmatprep.subr.mxu0 0.0
  %2793 = vmatpush1.msra.mxu0 0.0
  %2794 = vmatprep.subr.mxu0 0.0
  %2795 = vmatpush1.msra.mxu0 0.0
  %2796 = vmatprep.subr.mxu0 0.0
  %2797 = vmatpush1.msra.mxu0 0.0
  %2798 = vmatprep.subr.mxu0 0.0
  %2799 = vmatpush1.msra.mxu0 0.0
  %2800 = vmatprep.subr.mxu0 0.0
  %2801 = vmatpush1.msra.mxu0 0.0
  %2802 = vmatprep.subr.mxu0 0.0
  %2803 = vmatpush1.msra.mxu0 0.0
  %2804 = vmatprep.subr.mxu0 0.0
  %2805 = vmatpush1.msra.mxu0 0.0
  %2806 = vmatprep.subr.mxu0 0.0
  %2807 = vmatpush1.msra.mxu0 0.0
  %2808 = vmatprep.subr.mxu0 0.0
  %2809 = vmatpush1.msra.mxu0 0.0
  %2810 = vmatprep.mubr.f32.mxu0 0.0
  %2811 = vmatmul.mubr.f32.gmra.mrb[0].mxu0 %v2671
  %v2812 = vpop.f32.mrb[0].mxu0
  %v2813 = vadd.f32 %v2743, %v2812
  %v2814 = vpop.f32.mrb[0].mxu0
  %2815 = vdwg.mxu0
  %vm2816 = vcmask 80896
  %2817 = vst.msk [vmem:[%s9] sm:$0xff] %vm2816, %v2813
  // Predicated region
  $region38: #{obd_forward.1} parent=0 // pred_check
    _
  $region39: #{obd_forward.1} parent=0 // pred_check_branch
    %2819 = sbr.rel (0) target = $region41
  $region40: #{obd_forward.1} parent=0 // pred_region
    _
  $region41: #{obd_forward.1} parent=0 // pred_fallthru
    _
  // Predicated region
  $region42: #{obd_forward.1} parent=0 // pred_check
    _
  $region43: #{obd_forward.1} parent=0 // pred_check_branch
    %2821 = sbr.rel (0) target = $region45
  $region44: #{obd_forward.1} parent=0 // pred_region
    _
  $region45: #{obd_forward.1} parent=0 // pred_fallthru
    _

</llo_original>
